<compile_context>
chip_gen: v7x
topology: tpu7x:2x2x1
jax: 0.10.0
libtpu: 0.0.40
codegen_flags: <defaults>
</compile_context>

<pallas_src>
import math

import jax
import jax.numpy as jnp
from jax.experimental import pallas as pl
from jax.experimental.pallas import tpu as pltpu


# ------------------------------ Pallas kernel ------------------------------ #

def _make_fused_kernel(n_experts, n_xyz_layers, skips, H, Hd):
    """Fused NerfExperts forward over one row tile.

    Ref order: idx, emb_xyz, emb_dir, (Wp, bp) per layer
    [mlp_xyz[0..n_xyz-1], intermediate+alpha (d_out=H+1), color0 (d_out=Hd)],
    then the output ref.
    """

    def expert_matmul(parts, b_ref, idx_col, d_out, relu):
        # parts: list of (x, w) whose products are summed (split-matmul concat).
        y_all = None
        for x, w in parts:
            p = jnp.dot(x, w, preferred_element_type=jnp.float32)
            y_all = p if y_all is None else y_all + p
        y_all = y_all + b_ref[...]                      # (bm, E*d_out)

        # Select the owning expert's d_out-wide slab (mask + slab sum).
        lane = jax.lax.broadcasted_iota(jnp.int32, y_all.shape, 1)
        lo = idx_col * d_out                            # (bm, 1)
        mask = jnp.logical_and(lane >= lo, lane < lo + d_out)
        masked = jnp.where(mask, y_all, 0.0)
        y = masked[:, 0:d_out]
        for e in range(1, n_experts):
            y = y + masked[:, e * d_out:(e + 1) * d_out]
        if relu:
            y = jnp.maximum(y, 0.0)
        return y                                        # (bm, d_out)

    def kernel(idx_ref, xyz_ref, dir_ref, *refs):
        o_ref = refs[-1]
        wb = refs[:-1]
        assert len(wb) == 2 * (n_xyz_layers + 2)

        idx_col = idx_ref[...]                          # (bm, 1) int32
        emb = xyz_ref[...]                              # (bm, emb_xyz_dim)

        # MLPWithInputSkips (d_out == H for every layer in NerfExperts).
        h = emb
        for li in range(n_xyz_layers):
            w_ref, b_ref = wb[2 * li], wb[2 * li + 1]
            if li in skips:
                # cat([h, emb]) @ W  ==  h @ W[:H] + emb @ W[H:]
                parts = [(h, w_ref[0:H, :]), (emb, w_ref[H:, :])]
            else:
                parts = [(h, w_ref[...])]
            h = expert_matmul(parts, b_ref, idx_col, H, relu=True)
        features = h                                    # (bm, H)

        # intermediate_linear (H) and alpha head (1) fused along d_out.
        wia_ref, bia_ref = wb[2 * n_xyz_layers], wb[2 * n_xyz_layers + 1]
        ia = expert_matmul([(features, wia_ref[...])], bia_ref, idx_col,
                           H + 1, relu=False)
        inter = ia[:, 0:H]
        alpha = ia[:, H:H + 1]

        # color_layer[0]: cat([inter, emb_dir]) @ Wc  (split matmul) + relu.
        wc_ref, bc_ref = wb[2 * n_xyz_layers + 2], wb[2 * n_xyz_layers + 3]
        color = expert_matmul([(inter, wc_ref[0:H, :]),
                               (dir_ref[...], wc_ref[H:, :])],
                              bc_ref, idx_col, Hd, relu=True)

        # sigmoid(cat([color, alpha])) written as two lane slices.
        o_ref[:, 0:Hd] = 1.0 / (1.0 + jnp.exp(-color))
        o_ref[:, Hd:Hd + 1] = 1.0 / (1.0 + jnp.exp(-alpha))

    return kernel


# ------------------------------ host wrapper -------------------------------- #

def _round_up(x, m):
    return ((x + m - 1) // m) * m


def _pack_expert_layer(W, b):
    """(E, d_in, d_out), (E, d_out) -> (d_in, E*d_out), (1, E*d_out)."""
    E, d_in, d_out = W.shape
    Wp = jnp.transpose(W, (1, 0, 2)).reshape(d_in, E * d_out)
    bp = b.reshape(1, E * d_out)
    return Wp, bp


def harmonic_embedding(x, n_harmonic):
    # pytorch3d HarmonicEmbedding (omega0=1, logspace, no appended input).
    freqs = 2.0 ** jnp.arange(n_harmonic, dtype=jnp.float32)
    embed = (x[..., None] * freqs).reshape(x.shape[:-1] + (-1,))
    return jnp.concatenate([jnp.sin(embed), jnp.cos(embed)], axis=-1)


def nerf_experts_forward_pallas(params, points, directions, index, cfg, *, bm=512):
    E = cfg['n_experts']
    H = cfg['n_hidden_neurons_xyz']
    Hd = cfg['n_hidden_neurons_dir']
    skips = frozenset(cfg['append_xyz'])
    B = points.shape[0]

    emb_xyz = jnp.concatenate(
        [harmonic_embedding(points, cfg['n_harmonic_functions_xyz']), points], -1)
    emb_dir = jnp.concatenate(
        [harmonic_embedding(directions, cfg['n_harmonic_functions_dir']),
         directions], -1)
    idx2d = index.astype(jnp.int32).reshape(B, 1)

    # Pack experts along the N axis (one lane-dense matmul per layer).
    packed = []
    for W, b in params['mlp_xyz']:
        packed += list(_pack_expert_layer(W, b))
    Wi, bi = params['intermediate_linear']
    Wa, ba = params['alpha_layer']
    Wia = jnp.concatenate([Wi, Wa], axis=-1)        # (E, H, H+1)
    bia = jnp.concatenate([bi, ba], axis=-1)        # (E, H+1)
    packed += list(_pack_expert_layer(Wia, bia))
    Wc0, bc0 = params['color_layer'][0]
    packed += list(_pack_expert_layer(Wc0, bc0))
    # TODO(synk): color_layer[1] is dead code in the reference forward
    # (early return in _get_colors); it is initialized but never executed.

    d_exyz = emb_xyz.shape[-1]
    d_edir = emb_dir.shape[-1]
    d_out = Hd + 1

    # Row tiling: large tiles, pad batch to a multiple of the tile.
    bm_eff = max(8, min(bm, _round_up(B, 8)))
    Bp = _round_up(B, bm_eff)
    if Bp != B:
        pad = Bp - B
        emb_xyz = jnp.pad(emb_xyz, ((0, pad), (0, 0)))
        emb_dir = jnp.pad(emb_dir, ((0, pad), (0, 0)))
        idx2d = jnp.pad(idx2d, ((0, pad), (0, 0)))

    kernel = _make_fused_kernel(E, len(params['mlp_xyz']), skips, H, Hd)

    in_specs = [
        pl.BlockSpec((bm_eff, 1), lambda i: (i, 0)),        # index
        pl.BlockSpec((bm_eff, d_exyz), lambda i: (i, 0)),   # xyz embedding
        pl.BlockSpec((bm_eff, d_edir), lambda i: (i, 0)),   # dir embedding
    ]
    # Packed weights / biases: full tensors, VMEM-resident across the grid.
    for arr in packed:
        in_specs.append(pl.BlockSpec(arr.shape, lambda i: (0, 0)))

    out = pl.pallas_call(
        kernel,
        out_shape=jax.ShapeDtypeStruct((Bp, d_out), jnp.float32),
        grid_spec=pltpu.PrefetchScalarGridSpec(
            num_scalar_prefetch=0,
            grid=(Bp // bm_eff,),
            in_specs=in_specs,
            out_specs=pl.BlockSpec((bm_eff, d_out), lambda i: (i, 0)),
        ),
        compiler_params=pltpu.CompilerParams(
            dimension_semantics=("parallel",)),
    )(idx2d, emb_xyz, emb_dir, *packed)
    return out[:B]


# --------------------------- pure-JAX reference ----------------------------- #

def _experts_linear_ref(x, index, weight, bias, *, apply_relu=False):
    out = jnp.einsum('bi,bio->bo', x, weight[index]) + bias[index]
    return jnp.maximum(out, 0.0) if apply_relu else out


def nerf_experts_forward_ref(params, points, directions, index, cfg):
    emb_xyz = jnp.concatenate(
        [harmonic_embedding(points, cfg['n_harmonic_functions_xyz']), points], -1)
    skips = set(cfg['append_xyz'])
    out = emb_xyz
    for i, (W, b) in enumerate(params['mlp_xyz']):
        if i in skips:
            out = jnp.concatenate([out, emb_xyz], axis=-1)
        out = _experts_linear_ref(out, index, W, b, apply_relu=True)
    features = out

    Wa, ba = params['alpha_layer']
    alpha = _experts_linear_ref(features, index, Wa, ba, apply_relu=False)

    emb_dir = jnp.concatenate(
        [harmonic_embedding(directions, cfg['n_harmonic_functions_dir']),
         directions], -1)
    Wi, bi = params['intermediate_linear']
    inter = _experts_linear_ref(features, index, Wi, bi, apply_relu=False)
    color_in = jnp.concatenate([inter, emb_dir], axis=-1)
    Wc0, bc0 = params['color_layer'][0]
    color = _experts_linear_ref(color_in, index, Wc0, bc0, apply_relu=True)

    return jax.nn.sigmoid(jnp.concatenate([color, alpha], axis=-1))


# ------------------------------- init --------------------------------------- #

def init_experts_params(key, n_experts, d_in, d_out):
    # xavier_uniform per expert (bound symmetric in fan_in+fan_out),
    # bias ~ U(-1/sqrt(in_features), 1/sqrt(in_features)).
    kw, kb = jax.random.split(key)
    a = math.sqrt(6.0 / (d_in + d_out))
    W = jax.random.uniform(kw, (n_experts, d_in, d_out), jnp.float32, -a, a)
    bound = 1.0 / math.sqrt(d_in)
    b = jax.random.uniform(kb, (n_experts, d_out), jnp.float32, -bound, bound)
    return W, b


def init_nerf_experts(key, cfg):
    n_experts = cfg['n_experts']
    H = cfg['n_hidden_neurons_xyz']
    Hd = cfg['n_hidden_neurons_dir']
    emb_xyz = cfg['n_harmonic_functions_xyz'] * 2 * 5 + 5   # points are 5-dim
    emb_dir = cfg['n_harmonic_functions_dir'] * 2 * 3 + 3   # directions are 3-dim
    skips = set(cfg['append_xyz'])

    keys = jax.random.split(key, cfg['n_layers_xyz'] + 4)
    mlp_xyz = []
    for li in range(cfg['n_layers_xyz']):
        if li == 0:
            d_in = emb_xyz
        elif li in skips:
            d_in = H + emb_xyz
        else:
            d_in = H
        mlp_xyz.append(init_experts_params(keys[li], n_experts, d_in, H))

    nl = cfg['n_layers_xyz']
    intermediate = init_experts_params(keys[nl], n_experts, H, H)
    Wa, ba = init_experts_params(keys[nl + 1], n_experts, H, 1)
    ba = jnp.zeros_like(ba)          # alpha_layer.bias.data[:] = 0.0
    color0 = init_experts_params(keys[nl + 2], n_experts, H + emb_dir, Hd)
    color1 = init_experts_params(keys[nl + 3], n_experts, Hd, 3)  # dead in fwd
    return dict(mlp_xyz=mlp_xyz,
                intermediate_linear=intermediate,
                alpha_layer=(Wa, ba),
                color_layer=[color0, color1])


# --------------------------------- main -------------------------------------- #

if __name__ == "__main__":
    cfg = dict(
        n_harmonic_functions_xyz=2,
        n_harmonic_functions_dir=2,
        n_hidden_neurons_xyz=32,
        n_hidden_neurons_dir=16,
        n_layers_xyz=3,
        n_experts=4,
        append_xyz=(1,),
    )

    key = jax.random.PRNGKey(0)
    kp, kd, ki, kparams = jax.random.split(key, 4)
    B = 64
    points = jax.random.normal(kp, (B, 5), jnp.float32)
    directions = jax.random.normal(kd, (B, 3), jnp.float32)
    directions = directions / jnp.linalg.norm(directions, axis=-1, keepdims=True)
    index = jax.random.randint(ki, (B,), 0, cfg['n_experts'], dtype=jnp.int32)

    params = init_nerf_experts(kparams, cfg)

    fwd = jax.jit(lambda pr, p, d, i: nerf_experts_forward_pallas(pr, p, d, i, cfg))

    out = jax.block_until_ready(fwd(params, points, directions, index))
    assert out.shape == (B, cfg['n_hidden_neurons_dir'] + 1)
    ref = nerf_experts_forward_ref(params, points, directions, index, cfg)
    if not jnp.allclose(out, ref, atol=1e-3, rtol=1e-3):
        raise SystemExit("Pallas output mismatch vs pure-JAX reference (B=64)")

    # Exercise the ragged-batch (padding) path.
    B2 = 50
    out2 = jax.block_until_ready(
        fwd(params, points[:B2], directions[:B2], index[:B2]))
    ref2 = nerf_experts_forward_ref(params, points[:B2], directions[:B2],
                                    index[:B2], cfg)
    assert out2.shape == (B2, cfg['n_hidden_neurons_dir'] + 1)
    if not jnp.allclose(out2, ref2, atol=1e-3, rtol=1e-3):
        raise SystemExit("Pallas output mismatch vs pure-JAX reference (B=50)")

    print("KERNEL_OK")
</pallas_src>

<mosaic_0001>
module attributes {stable_mosaic.version = 11 : i64} {
  func.func @kernel(%arg0: i32, %arg1: memref<64x1xi32, #tpu.memory_space<vmem>>, %arg2: memref<64x25xf32, #tpu.memory_space<vmem>>, %arg3: memref<64x15xf32, #tpu.memory_space<vmem>>, %arg4: memref<25x128xf32, #tpu.memory_space<vmem>>, %arg5: memref<1x128xf32, #tpu.memory_space<vmem>>, %arg6: memref<57x128xf32, #tpu.memory_space<vmem>>, %arg7: memref<1x128xf32, #tpu.memory_space<vmem>>, %arg8: memref<32x128xf32, #tpu.memory_space<vmem>>, %arg9: memref<1x128xf32, #tpu.memory_space<vmem>>, %arg10: memref<32x132xf32, #tpu.memory_space<vmem>>, %arg11: memref<1x132xf32, #tpu.memory_space<vmem>>, %arg12: memref<47x64xf32, #tpu.memory_space<vmem>>, %arg13: memref<1x64xf32, #tpu.memory_space<vmem>>, %arg14: memref<64x17xf32, #tpu.memory_space<vmem>>) attributes {dimension_semantics = [#tpu.dimension_semantics<parallel>], iteration_bounds = array<i64: 1>, scalar_prefetch = 0 : i64, scratch_operands = 0 : i64, tpu.core_type = #tpu.core_type<tc>, window_params = [{transform_indices = @transform_0, window_bounds = array<i64: 64, 1>}, {transform_indices = @transform_1, window_bounds = array<i64: 64, 25>}, {transform_indices = @transform_2, window_bounds = array<i64: 64, 15>}, {pipeline_mode = #tpu.pipeline_mode<synchronous>, transform_indices = @transform_3, window_bounds = array<i64: 25, 128>}, {pipeline_mode = #tpu.pipeline_mode<synchronous>, transform_indices = @transform_4, window_bounds = array<i64: 1, 128>}, {pipeline_mode = #tpu.pipeline_mode<synchronous>, transform_indices = @transform_5, window_bounds = array<i64: 57, 128>}, {pipeline_mode = #tpu.pipeline_mode<synchronous>, transform_indices = @transform_6, window_bounds = array<i64: 1, 128>}, {pipeline_mode = #tpu.pipeline_mode<synchronous>, transform_indices = @transform_7, window_bounds = array<i64: 32, 128>}, {pipeline_mode = #tpu.pipeline_mode<synchronous>, transform_indices = @transform_8, window_bounds = array<i64: 1, 128>}, {pipeline_mode = #tpu.pipeline_mode<synchronous>, transform_indices = @transform_9, window_bounds = array<i64: 32, 132>}, {pipeline_mode = #tpu.pipeline_mode<synchronous>, transform_indices = @transform_10, window_bounds = array<i64: 1, 132>}, {pipeline_mode = #tpu.pipeline_mode<synchronous>, transform_indices = @transform_11, window_bounds = array<i64: 47, 64>}, {pipeline_mode = #tpu.pipeline_mode<synchronous>, transform_indices = @transform_12, window_bounds = array<i64: 1, 64>}, {transform_indices = @transform_13, window_bounds = array<i64: 64, 17>}]} {
    %c0 = arith.constant 0 : index
    %c0_0 = arith.constant 0 : index
    %0 = vector.load %arg1[%c0, %c0_0] : memref<64x1xi32, #tpu.memory_space<vmem>>, vector<64x1xi32>
    %c0_1 = arith.constant 0 : index
    %c0_2 = arith.constant 0 : index
    %1 = vector.load %arg2[%c0_1, %c0_2] : memref<64x25xf32, #tpu.memory_space<vmem>>, vector<64x25xf32>
    %c0_3 = arith.constant 0 : index
    %c0_4 = arith.constant 0 : index
    %2 = vector.load %arg4[%c0_3, %c0_4] : memref<25x128xf32, #tpu.memory_space<vmem>>, vector<25x128xf32>
    %cst = arith.constant dense<0.000000e+00> : vector<64x128xf32>
    %3 = tpu.matmul %1, %2, %cst {dimension_numbers = #tpu.dot_dimension_numbers<[1], [0], [0], [1], [0, 0, 1, 1], [], []>} : vector<64x25xf32>, vector<25x128xf32>, vector<64x128xf32> -> vector<64x128xf32>
    %c0_5 = arith.constant 0 : index
    %c0_6 = arith.constant 0 : index
    %4 = vector.load %arg5[%c0_5, %c0_6] : memref<1x128xf32, #tpu.memory_space<vmem>>, vector<1x128xf32>
    %5 = vector.broadcast %4 : vector<1x128xf32> to vector<64x128xf32>
    %6 = arith.addf %3, %5 : vector<64x128xf32>
    %7 = tpu.iota {dimensions = array<i32: 1>} : vector<64x128xi32>
    %c32_i32 = arith.constant 32 : i32
    %8 = vector.broadcast %c32_i32 : i32 to vector<64x1xi32>
    %9 = arith.muli %0, %8 : vector<64x1xi32>
    %10 = vector.broadcast %9 : vector<64x1xi32> to vector<64x128xi32>
    %11 = arith.cmpi sge, %7, %10 : vector<64x128xi32>
    %c32_i32_7 = arith.constant 32 : i32
    %12 = vector.broadcast %c32_i32_7 : i32 to vector<64x1xi32>
    %13 = arith.addi %9, %12 : vector<64x1xi32>
    %14 = vector.broadcast %13 : vector<64x1xi32> to vector<64x128xi32>
    %15 = arith.cmpi slt, %7, %14 : vector<64x128xi32>
    %16 = arith.andi %11, %15 : vector<64x128xi1>
    %cst_8 = arith.constant 0.000000e+00 : f32
    %17 = vector.broadcast %cst_8 : f32 to vector<64x128xf32>
    %18 = arith.select %16, %6, %17 : vector<64x128xi1>, vector<64x128xf32>
    %19 = vector.extract_strided_slice %18 {offsets = [0, 0], sizes = [64, 32], strides = [1, 1]} : vector<64x128xf32> to vector<64x32xf32>
    %20 = vector.extract_strided_slice %18 {offsets = [0, 32], sizes = [64, 32], strides = [1, 1]} : vector<64x128xf32> to vector<64x32xf32>
    %21 = arith.addf %19, %20 : vector<64x32xf32>
    %22 = vector.extract_strided_slice %18 {offsets = [0, 64], sizes = [64, 32], strides = [1, 1]} : vector<64x128xf32> to vector<64x32xf32>
    %23 = arith.addf %21, %22 : vector<64x32xf32>
    %24 = vector.extract_strided_slice %18 {offsets = [0, 96], sizes = [64, 32], strides = [1, 1]} : vector<64x128xf32> to vector<64x32xf32>
    %25 = arith.addf %23, %24 : vector<64x32xf32>
    %cst_9 = arith.constant 0.000000e+00 : f32
    %26 = vector.broadcast %cst_9 : f32 to vector<64x32xf32>
    %27 = arith.maximumf %25, %26 : vector<64x32xf32>
    %c0_10 = arith.constant 0 : index
    %c0_11 = arith.constant 0 : index
    %28 = vector.load %arg6[%c0_10, %c0_11] : memref<57x128xf32, #tpu.memory_space<vmem>>, vector<32x128xf32>
    %c32 = arith.constant 32 : index
    %c0_12 = arith.constant 0 : index
    %29 = vector.load %arg6[%c32, %c0_12] : memref<57x128xf32, #tpu.memory_space<vmem>>, vector<25x128xf32>
    %cst_13 = arith.constant dense<0.000000e+00> : vector<64x128xf32>
    %30 = tpu.matmul %27, %28, %cst_13 {dimension_numbers = #tpu.dot_dimension_numbers<[1], [0], [0], [1], [0, 0, 1, 1], [], []>} : vector<64x32xf32>, vector<32x128xf32>, vector<64x128xf32> -> vector<64x128xf32>
    %cst_14 = arith.constant dense<0.000000e+00> : vector<64x128xf32>
    %31 = tpu.matmul %1, %29, %cst_14 {dimension_numbers = #tpu.dot_dimension_numbers<[1], [0], [0], [1], [0, 0, 1, 1], [], []>} : vector<64x25xf32>, vector<25x128xf32>, vector<64x128xf32> -> vector<64x128xf32>
    %32 = arith.addf %30, %31 : vector<64x128xf32>
    %c0_15 = arith.constant 0 : index
    %c0_16 = arith.constant 0 : index
    %33 = vector.load %arg7[%c0_15, %c0_16] : memref<1x128xf32, #tpu.memory_space<vmem>>, vector<1x128xf32>
    %34 = vector.broadcast %33 : vector<1x128xf32> to vector<64x128xf32>
    %35 = arith.addf %32, %34 : vector<64x128xf32>
    %36 = tpu.iota {dimensions = array<i32: 1>} : vector<64x128xi32>
    %c32_i32_17 = arith.constant 32 : i32
    %37 = vector.broadcast %c32_i32_17 : i32 to vector<64x1xi32>
    %38 = arith.muli %0, %37 : vector<64x1xi32>
    %39 = vector.broadcast %38 : vector<64x1xi32> to vector<64x128xi32>
    %40 = arith.cmpi sge, %36, %39 : vector<64x128xi32>
    %c32_i32_18 = arith.constant 32 : i32
    %41 = vector.broadcast %c32_i32_18 : i32 to vector<64x1xi32>
    %42 = arith.addi %38, %41 : vector<64x1xi32>
    %43 = vector.broadcast %42 : vector<64x1xi32> to vector<64x128xi32>
    %44 = arith.cmpi slt, %36, %43 : vector<64x128xi32>
    %45 = arith.andi %40, %44 : vector<64x128xi1>
    %cst_19 = arith.constant 0.000000e+00 : f32
    %46 = vector.broadcast %cst_19 : f32 to vector<64x128xf32>
    %47 = arith.select %45, %35, %46 : vector<64x128xi1>, vector<64x128xf32>
    %48 = vector.extract_strided_slice %47 {offsets = [0, 0], sizes = [64, 32], strides = [1, 1]} : vector<64x128xf32> to vector<64x32xf32>
    %49 = vector.extract_strided_slice %47 {offsets = [0, 32], sizes = [64, 32], strides = [1, 1]} : vector<64x128xf32> to vector<64x32xf32>
    %50 = arith.addf %48, %49 : vector<64x32xf32>
    %51 = vector.extract_strided_slice %47 {offsets = [0, 64], sizes = [64, 32], strides = [1, 1]} : vector<64x128xf32> to vector<64x32xf32>
    %52 = arith.addf %50, %51 : vector<64x32xf32>
    %53 = vector.extract_strided_slice %47 {offsets = [0, 96], sizes = [64, 32], strides = [1, 1]} : vector<64x128xf32> to vector<64x32xf32>
    %54 = arith.addf %52, %53 : vector<64x32xf32>
    %cst_20 = arith.constant 0.000000e+00 : f32
    %55 = vector.broadcast %cst_20 : f32 to vector<64x32xf32>
    %56 = arith.maximumf %54, %55 : vector<64x32xf32>
    %c0_21 = arith.constant 0 : index
    %c0_22 = arith.constant 0 : index
    %57 = vector.load %arg8[%c0_21, %c0_22] : memref<32x128xf32, #tpu.memory_space<vmem>>, vector<32x128xf32>
    %cst_23 = arith.constant dense<0.000000e+00> : vector<64x128xf32>
    %58 = tpu.matmul %56, %57, %cst_23 {dimension_numbers = #tpu.dot_dimension_numbers<[1], [0], [0], [1], [0, 0, 1, 1], [], []>} : vector<64x32xf32>, vector<32x128xf32>, vector<64x128xf32> -> vector<64x128xf32>
    %c0_24 = arith.constant 0 : index
    %c0_25 = arith.constant 0 : index
    %59 = vector.load %arg9[%c0_24, %c0_25] : memref<1x128xf32, #tpu.memory_space<vmem>>, vector<1x128xf32>
    %60 = vector.broadcast %59 : vector<1x128xf32> to vector<64x128xf32>
    %61 = arith.addf %58, %60 : vector<64x128xf32>
    %62 = tpu.iota {dimensions = array<i32: 1>} : vector<64x128xi32>
    %c32_i32_26 = arith.constant 32 : i32
    %63 = vector.broadcast %c32_i32_26 : i32 to vector<64x1xi32>
    %64 = arith.muli %0, %63 : vector<64x1xi32>
    %65 = vector.broadcast %64 : vector<64x1xi32> to vector<64x128xi32>
    %66 = arith.cmpi sge, %62, %65 : vector<64x128xi32>
    %c32_i32_27 = arith.constant 32 : i32
    %67 = vector.broadcast %c32_i32_27 : i32 to vector<64x1xi32>
    %68 = arith.addi %64, %67 : vector<64x1xi32>
    %69 = vector.broadcast %68 : vector<64x1xi32> to vector<64x128xi32>
    %70 = arith.cmpi slt, %62, %69 : vector<64x128xi32>
    %71 = arith.andi %66, %70 : vector<64x128xi1>
    %cst_28 = arith.constant 0.000000e+00 : f32
    %72 = vector.broadcast %cst_28 : f32 to vector<64x128xf32>
    %73 = arith.select %71, %61, %72 : vector<64x128xi1>, vector<64x128xf32>
    %74 = vector.extract_strided_slice %73 {offsets = [0, 0], sizes = [64, 32], strides = [1, 1]} : vector<64x128xf32> to vector<64x32xf32>
    %75 = vector.extract_strided_slice %73 {offsets = [0, 32], sizes = [64, 32], strides = [1, 1]} : vector<64x128xf32> to vector<64x32xf32>
    %76 = arith.addf %74, %75 : vector<64x32xf32>
    %77 = vector.extract_strided_slice %73 {offsets = [0, 64], sizes = [64, 32], strides = [1, 1]} : vector<64x128xf32> to vector<64x32xf32>
    %78 = arith.addf %76, %77 : vector<64x32xf32>
    %79 = vector.extract_strided_slice %73 {offsets = [0, 96], sizes = [64, 32], strides = [1, 1]} : vector<64x128xf32> to vector<64x32xf32>
    %80 = arith.addf %78, %79 : vector<64x32xf32>
    %cst_29 = arith.constant 0.000000e+00 : f32
    %81 = vector.broadcast %cst_29 : f32 to vector<64x32xf32>
    %82 = arith.maximumf %80, %81 : vector<64x32xf32>
    %c0_30 = arith.constant 0 : index
    %c0_31 = arith.constant 0 : index
    %83 = vector.load %arg10[%c0_30, %c0_31] : memref<32x132xf32, #tpu.memory_space<vmem>>, vector<32x132xf32>
    %cst_32 = arith.constant dense<0.000000e+00> : vector<64x132xf32>
    %84 = tpu.matmul %82, %83, %cst_32 {dimension_numbers = #tpu.dot_dimension_numbers<[1], [0], [0], [1], [0, 0, 1, 1], [], []>} : vector<64x32xf32>, vector<32x132xf32>, vector<64x132xf32> -> vector<64x132xf32>
    %c0_33 = arith.constant 0 : index
    %c0_34 = arith.constant 0 : index
    %85 = vector.load %arg11[%c0_33, %c0_34] : memref<1x132xf32, #tpu.memory_space<vmem>>, vector<1x132xf32>
    %86 = vector.broadcast %85 : vector<1x132xf32> to vector<64x132xf32>
    %87 = arith.addf %84, %86 : vector<64x132xf32>
    %88 = tpu.iota {dimensions = array<i32: 1>} : vector<64x132xi32>
    %c33_i32 = arith.constant 33 : i32
    %89 = vector.broadcast %c33_i32 : i32 to vector<64x1xi32>
    %90 = arith.muli %0, %89 : vector<64x1xi32>
    %91 = vector.broadcast %90 : vector<64x1xi32> to vector<64x132xi32>
    %92 = arith.cmpi sge, %88, %91 : vector<64x132xi32>
    %c33_i32_35 = arith.constant 33 : i32
    %93 = vector.broadcast %c33_i32_35 : i32 to vector<64x1xi32>
    %94 = arith.addi %90, %93 : vector<64x1xi32>
    %95 = vector.broadcast %94 : vector<64x1xi32> to vector<64x132xi32>
    %96 = arith.cmpi slt, %88, %95 : vector<64x132xi32>
    %97 = arith.andi %92, %96 : vector<64x132xi1>
    %cst_36 = arith.constant 0.000000e+00 : f32
    %98 = vector.broadcast %cst_36 : f32 to vector<64x132xf32>
    %99 = arith.select %97, %87, %98 : vector<64x132xi1>, vector<64x132xf32>
    %100 = vector.extract_strided_slice %99 {offsets = [0, 0], sizes = [64, 33], strides = [1, 1]} : vector<64x132xf32> to vector<64x33xf32>
    %101 = vector.extract_strided_slice %99 {offsets = [0, 33], sizes = [64, 33], strides = [1, 1]} : vector<64x132xf32> to vector<64x33xf32>
    %102 = arith.addf %100, %101 : vector<64x33xf32>
    %103 = vector.extract_strided_slice %99 {offsets = [0, 66], sizes = [64, 33], strides = [1, 1]} : vector<64x132xf32> to vector<64x33xf32>
    %104 = arith.addf %102, %103 : vector<64x33xf32>
    %105 = vector.extract_strided_slice %99 {offsets = [0, 99], sizes = [64, 33], strides = [1, 1]} : vector<64x132xf32> to vector<64x33xf32>
    %106 = arith.addf %104, %105 : vector<64x33xf32>
    %107 = vector.extract_strided_slice %106 {offsets = [0, 0], sizes = [64, 32], strides = [1, 1]} : vector<64x33xf32> to vector<64x32xf32>
    %108 = vector.extract_strided_slice %106 {offsets = [0, 32], sizes = [64, 1], strides = [1, 1]} : vector<64x33xf32> to vector<64x1xf32>
    %c0_37 = arith.constant 0 : index
    %c0_38 = arith.constant 0 : index
    %109 = vector.load %arg12[%c0_37, %c0_38] : memref<47x64xf32, #tpu.memory_space<vmem>>, vector<32x64xf32>
    %c0_39 = arith.constant 0 : index
    %c0_40 = arith.constant 0 : index
    %110 = vector.load %arg3[%c0_39, %c0_40] : memref<64x15xf32, #tpu.memory_space<vmem>>, vector<64x15xf32>
    %c32_41 = arith.constant 32 : index
    %c0_42 = arith.constant 0 : index
    %111 = vector.load %arg12[%c32_41, %c0_42] : memref<47x64xf32, #tpu.memory_space<vmem>>, vector<15x64xf32>
    %cst_43 = arith.constant dense<0.000000e+00> : vector<64x64xf32>
    %112 = tpu.matmul %107, %109, %cst_43 {dimension_numbers = #tpu.dot_dimension_numbers<[1], [0], [0], [1], [0, 0, 1, 1], [], []>} : vector<64x32xf32>, vector<32x64xf32>, vector<64x64xf32> -> vector<64x64xf32>
    %cst_44 = arith.constant dense<0.000000e+00> : vector<64x64xf32>
    %113 = tpu.matmul %110, %111, %cst_44 {dimension_numbers = #tpu.dot_dimension_numbers<[1], [0], [0], [1], [0, 0, 1, 1], [], []>} : vector<64x15xf32>, vector<15x64xf32>, vector<64x64xf32> -> vector<64x64xf32>
    %114 = arith.addf %112, %113 : vector<64x64xf32>
    %c0_45 = arith.constant 0 : index
    %c0_46 = arith.constant 0 : index
    %115 = vector.load %arg13[%c0_45, %c0_46] : memref<1x64xf32, #tpu.memory_space<vmem>>, vector<1x64xf32>
    %116 = vector.broadcast %115 : vector<1x64xf32> to vector<64x64xf32>
    %117 = arith.addf %114, %116 : vector<64x64xf32>
    %118 = tpu.iota {dimensions = array<i32: 1>} : vector<64x64xi32>
    %c16_i32 = arith.constant 16 : i32
    %119 = vector.broadcast %c16_i32 : i32 to vector<64x1xi32>
    %120 = arith.muli %0, %119 : vector<64x1xi32>
    %121 = vector.broadcast %120 : vector<64x1xi32> to vector<64x64xi32>
    %122 = arith.cmpi sge, %118, %121 : vector<64x64xi32>
    %c16_i32_47 = arith.constant 16 : i32
    %123 = vector.broadcast %c16_i32_47 : i32 to vector<64x1xi32>
    %124 = arith.addi %120, %123 : vector<64x1xi32>
    %125 = vector.broadcast %124 : vector<64x1xi32> to vector<64x64xi32>
    %126 = arith.cmpi slt, %118, %125 : vector<64x64xi32>
    %127 = arith.andi %122, %126 : vector<64x64xi1>
    %cst_48 = arith.constant 0.000000e+00 : f32
    %128 = vector.broadcast %cst_48 : f32 to vector<64x64xf32>
    %129 = arith.select %127, %117, %128 : vector<64x64xi1>, vector<64x64xf32>
    %130 = vector.extract_strided_slice %129 {offsets = [0, 0], sizes = [64, 16], strides = [1, 1]} : vector<64x64xf32> to vector<64x16xf32>
    %131 = vector.extract_strided_slice %129 {offsets = [0, 16], sizes = [64, 16], strides = [1, 1]} : vector<64x64xf32> to vector<64x16xf32>
    %132 = arith.addf %130, %131 : vector<64x16xf32>
    %133 = vector.extract_strided_slice %129 {offsets = [0, 32], sizes = [64, 16], strides = [1, 1]} : vector<64x64xf32> to vector<64x16xf32>
    %134 = arith.addf %132, %133 : vector<64x16xf32>
    %135 = vector.extract_strided_slice %129 {offsets = [0, 48], sizes = [64, 16], strides = [1, 1]} : vector<64x64xf32> to vector<64x16xf32>
    %136 = arith.addf %134, %135 : vector<64x16xf32>
    %cst_49 = arith.constant 0.000000e+00 : f32
    %137 = vector.broadcast %cst_49 : f32 to vector<64x16xf32>
    %138 = arith.maximumf %136, %137 : vector<64x16xf32>
    %cst_50 = arith.constant 0.000000e+00 : f32
    %139 = vector.broadcast %cst_50 : f32 to vector<64x16xf32>
    %140 = arith.subf %139, %138 : vector<64x16xf32>
    %141 = math.exp %140 : vector<64x16xf32>
    %cst_51 = arith.constant 1.000000e+00 : f32
    %142 = vector.broadcast %cst_51 : f32 to vector<64x16xf32>
    %143 = arith.addf %142, %141 : vector<64x16xf32>
    %cst_52 = arith.constant 1.000000e+00 : f32
    %144 = vector.broadcast %cst_52 : f32 to vector<64x16xf32>
    %145 = arith.divf %144, %143 : vector<64x16xf32>
    %c0_53 = arith.constant 0 : index
    %c0_54 = arith.constant 0 : index
    %146 = vector.load %arg14[%c0_53, %c0_54] : memref<64x17xf32, #tpu.memory_space<vmem>>, vector<64x16xf32>
    tpu.vector_store %arg14[%c0_53, %c0_54], %145 {strides = array<i32>} : memref<64x17xf32, #tpu.memory_space<vmem>>, vector<64x16xf32>,
    %cst_55 = arith.constant 0.000000e+00 : f32
    %147 = vector.broadcast %cst_55 : f32 to vector<64x1xf32>
    %148 = arith.subf %147, %108 : vector<64x1xf32>
    %149 = math.exp %148 : vector<64x1xf32>
    %cst_56 = arith.constant 1.000000e+00 : f32
    %150 = vector.broadcast %cst_56 : f32 to vector<64x1xf32>
    %151 = arith.addf %150, %149 : vector<64x1xf32>
    %cst_57 = arith.constant 1.000000e+00 : f32
    %152 = vector.broadcast %cst_57 : f32 to vector<64x1xf32>
    %153 = arith.divf %152, %151 : vector<64x1xf32>
    %c0_58 = arith.constant 0 : index
    %c16 = arith.constant 16 : index
    %154 = vector.load %arg14[%c0_58, %c16] : memref<64x17xf32, #tpu.memory_space<vmem>>, vector<64x1xf32>
    tpu.vector_store %arg14[%c0_58, %c16], %153 {strides = array<i32>} : memref<64x17xf32, #tpu.memory_space<vmem>>, vector<64x1xf32>,
    return
  }
  func.func @transform_0(%arg0: i32) -> (i32, i32) {
    %c0_i32 = arith.constant 0 : i32
    %c0_i32_0 = arith.constant 0 : i32
    return %arg0, %c0_i32 : i32, i32
  }
  func.func @transform_1(%arg0: i32) -> (i32, i32) {
    %c0_i32 = arith.constant 0 : i32
    %c0_i32_0 = arith.constant 0 : i32
    return %arg0, %c0_i32 : i32, i32
  }
  func.func @transform_2(%arg0: i32) -> (i32, i32) {
    %c0_i32 = arith.constant 0 : i32
    %c0_i32_0 = arith.constant 0 : i32
    return %arg0, %c0_i32 : i32, i32
  }
  func.func @transform_3(%arg0: i32) -> (i32, i32) {
    %c0_i32 = arith.constant 0 : i32
    %c0_i32_0 = arith.constant 0 : i32
    %c0_i32_1 = arith.constant 0 : i32
    return %c0_i32, %c0_i32_0 : i32, i32
  }
  func.func @transform_4(%arg0: i32) -> (i32, i32) {
    %c0_i32 = arith.constant 0 : i32
    %c0_i32_0 = arith.constant 0 : i32
    %c0_i32_1 = arith.constant 0 : i32
    return %c0_i32, %c0_i32_0 : i32, i32
  }
  func.func @transform_5(%arg0: i32) -> (i32, i32) {
    %c0_i32 = arith.constant 0 : i32
    %c0_i32_0 = arith.constant 0 : i32
    %c0_i32_1 = arith.constant 0 : i32
    return %c0_i32, %c0_i32_0 : i32, i32
  }
  func.func @transform_6(%arg0: i32) -> (i32, i32) {
    %c0_i32 = arith.constant 0 : i32
    %c0_i32_0 = arith.constant 0 : i32
    %c0_i32_1 = arith.constant 0 : i32
    return %c0_i32, %c0_i32_0 : i32, i32
  }
  func.func @transform_7(%arg0: i32) -> (i32, i32) {
    %c0_i32 = arith.constant 0 : i32
    %c0_i32_0 = arith.constant 0 : i32
    %c0_i32_1 = arith.constant 0 : i32
    return %c0_i32, %c0_i32_0 : i32, i32
  }
  func.func @transform_8(%arg0: i32) -> (i32, i32) {
    %c0_i32 = arith.constant 0 : i32
    %c0_i32_0 = arith.constant 0 : i32
    %c0_i32_1 = arith.constant 0 : i32
    return %c0_i32, %c0_i32_0 : i32, i32
  }
  func.func @transform_9(%arg0: i32) -> (i32, i32) {
    %c0_i32 = arith.constant 0 : i32
    %c0_i32_0 = arith.constant 0 : i32
    %c0_i32_1 = arith.constant 0 : i32
    return %c0_i32, %c0_i32_0 : i32, i32
  }
  func.func @transform_10(%arg0: i32) -> (i32, i32) {
    %c0_i32 = arith.constant 0 : i32
    %c0_i32_0 = arith.constant 0 : i32
    %c0_i32_1 = arith.constant 0 : i32
    return %c0_i32, %c0_i32_0 : i32, i32
  }
  func.func @transform_11(%arg0: i32) -> (i32, i32) {
    %c0_i32 = arith.constant 0 : i32
    %c0_i32_0 = arith.constant 0 : i32
    %c0_i32_1 = arith.constant 0 : i32
    return %c0_i32, %c0_i32_0 : i32, i32
  }
  func.func @transform_12(%arg0: i32) -> (i32, i32) {
    %c0_i32 = arith.constant 0 : i32
    %c0_i32_0 = arith.constant 0 : i32
    %c0_i32_1 = arith.constant 0 : i32
    return %c0_i32, %c0_i32_0 : i32, i32
  }
  func.func @transform_13(%arg0: i32) -> (i32, i32) {
    %c0_i32 = arith.constant 0 : i32
    %c0_i32_0 = arith.constant 0 : i32
    return %arg0, %c0_i32 : i32, i32
  }
}

</mosaic_0001>

<llo_original>
// kernel: _lambda_.1
$region0: #{_lambda_.1}
  #allocation0 [shape = 'u32[]', space=smem, size = 0x4, offset = 0x4, fixed_abs, tag = 'smem constant byte address 0x4 - core index']
  #allocation1 [shape = 'u32[144,128]{1,0:T(1,128)}', space=vmem, size = 0x12000, scoped, tag = 'internal scratch']
  %s0 = inlined_call_operand.vmem [shape: s32[64,1], index: 0, kind: input, shape index: {}]
  %s1 = inlined_call_operand.vmem [shape: f32[64,25], index: 1, kind: input, shape index: {}]
  %s2 = inlined_call_operand.vmem [shape: f32[64,15], index: 2, kind: input, shape index: {}]
  %s3 = inlined_call_operand.vmem [shape: f32[25,128], index: 3, kind: input, shape index: {}]
  %s4 = inlined_call_operand.vmem [shape: f32[1,128], index: 4, kind: input, shape index: {}]
  %s5 = inlined_call_operand.vmem [shape: f32[57,128], index: 5, kind: input, shape index: {}]
  %s6 = inlined_call_operand.vmem [shape: f32[1,128], index: 6, kind: input, shape index: {}]
  %s7 = inlined_call_operand.vmem [shape: f32[32,128], index: 7, kind: input, shape index: {}]
  %s8 = inlined_call_operand.vmem [shape: f32[1,128], index: 8, kind: input, shape index: {}]
  %s9 = inlined_call_operand.vmem [shape: f32[32,132], index: 9, kind: input, shape index: {}]
  %s10 = inlined_call_operand.vmem [shape: f32[1,132], index: 10, kind: input, shape index: {}]
  %s11 = inlined_call_operand.vmem [shape: f32[47,64], index: 11, kind: input, shape index: {}]
  %s12 = inlined_call_operand.vmem [shape: f32[1,64], index: 12, kind: input, shape index: {}]
  %s13 = inlined_call_operand.vmem [shape: f32[64,17], index: 13, kind: output, shape index: {}]
  %s14 = sld [smem:[#allocation0]]
  $region62: #{_lambda_.1} parent=0
    _
  %s16 = ssub.s32 1, %s14
  %s17 = scalar_select 0, %s16, %s14
  // Predicated region
  $region2: #{_lambda_.1} parent=0 // pred_check
    _
  $region3: #{_lambda_.1} parent=0 // pred_check_branch
    %19 = sbr.rel (0) target = $region5
  $region4: #{_lambda_.1} parent=0 // pred_region
    _
  $region5: #{_lambda_.1} parent=0 // pred_fallthru
    _
  // Predicated region
  $region6: #{_lambda_.1} parent=0 // pred_check
    _
  $region7: #{_lambda_.1} parent=0 // pred_check_branch
    %21 = sbr.rel (0) target = $region9
  $region8: #{_lambda_.1} parent=0 // pred_region
    _
  $region9: #{_lambda_.1} parent=0 // pred_fallthru
    _
  // Predicated region
  $region10: #{_lambda_.1} parent=0 // pred_check
    _
  $region11: #{_lambda_.1} parent=0 // pred_check_branch
    %23 = sbr.rel (0) target = $region13
  $region12: #{_lambda_.1} parent=0 // pred_region
    _
  $region13: #{_lambda_.1} parent=0 // pred_fallthru
    _
  // Predicated region
  $region14: #{_lambda_.1} parent=0 // pred_check
    _
  $region15: #{_lambda_.1} parent=0 // pred_check_branch
    %25 = sbr.rel (0) target = $region17
  $region16: #{_lambda_.1} parent=0 // pred_region
    _
  $region17: #{_lambda_.1} parent=0 // pred_fallthru
    _
  // Predicated region
  $region18: #{_lambda_.1} parent=0 // pred_check
    _
  $region19: #{_lambda_.1} parent=0 // pred_check_branch
    %27 = sbr.rel (0) target = $region21
  $region20: #{_lambda_.1} parent=0 // pred_region
    _
  $region21: #{_lambda_.1} parent=0 // pred_fallthru
    _
  // Predicated region
  $region22: #{_lambda_.1} parent=0 // pred_check
    _
  $region23: #{_lambda_.1} parent=0 // pred_check_branch
    %29 = sbr.rel (0) target = $region25
  $region24: #{_lambda_.1} parent=0 // pred_region
    _
  $region25: #{_lambda_.1} parent=0 // pred_fallthru
    _
  // Predicated region
  $region26: #{_lambda_.1} parent=0 // pred_check
    _
  $region27: #{_lambda_.1} parent=0 // pred_check_branch
    %31 = sbr.rel (0) target = $region29
  $region28: #{_lambda_.1} parent=0 // pred_region
    _
  $region29: #{_lambda_.1} parent=0 // pred_fallthru
    _
  // Predicated region
  $region30: #{_lambda_.1} parent=0 // pred_check
    _
  $region31: #{_lambda_.1} parent=0 // pred_check_branch
    %33 = sbr.rel (0) target = $region33
  $region32: #{_lambda_.1} parent=0 // pred_region
    _
  $region33: #{_lambda_.1} parent=0 // pred_fallthru
    _
  // Predicated region
  $region34: #{_lambda_.1} parent=0 // pred_check
    _
  $region35: #{_lambda_.1} parent=0 // pred_check_branch
    %35 = sbr.rel (0) target = $region37
  $region36: #{_lambda_.1} parent=0 // pred_region
    _
  $region37: #{_lambda_.1} parent=0 // pred_fallthru
    _
  // Predicated region
  $region38: #{_lambda_.1} parent=0 // pred_check
    _
  $region39: #{_lambda_.1} parent=0 // pred_check_branch
    %37 = sbr.rel (0) target = $region41
  $region40: #{_lambda_.1} parent=0 // pred_region
    _
  $region41: #{_lambda_.1} parent=0 // pred_fallthru
    _
  // Predicated region
  $region42: #{_lambda_.1} parent=0 // pred_check
    _
  $region43: #{_lambda_.1} parent=0 // pred_check_branch
    %39 = sbr.rel (0) target = $region45
  $region44: #{_lambda_.1} parent=0 // pred_region
    _
  $region45: #{_lambda_.1} parent=0 // pred_fallthru
    _
  // Predicated region
  $region46: #{_lambda_.1} parent=0 // pred_check
    _
  $region47: #{_lambda_.1} parent=0 // pred_check_branch
    %41 = sbr.rel (0) target = $region49
  $region48: #{_lambda_.1} parent=0 // pred_region
    _
  $region49: #{_lambda_.1} parent=0 // pred_fallthru
    _
  // Predicated region
  $region50: #{_lambda_.1} parent=0 // pred_check
    _
  $region51: #{_lambda_.1} parent=0 // pred_check_branch
    %43 = sbr.rel (0) target = $region53
  $region52: #{_lambda_.1} parent=0 // pred_region
    _
  $region53: #{_lambda_.1} parent=0 // pred_fallthru
    _
  %v44 = vld [vmem:[%s0] sm:$0xff]
  %v45 = vld [vmem:[%s0 + $0x8] sm:$0xff]
  %v46 = vld [vmem:[%s0 + $0x10] sm:$0xff]
  %v47 = vld [vmem:[%s0 + $0x18] sm:$0xff]
  %v48 = vld [vmem:[%s0 + $0x20] sm:$0xff]
  %v49 = vld [vmem:[%s0 + $0x28] sm:$0xff]
  %v50 = vld [vmem:[%s0 + $0x30] sm:$0xff]
  %v51 = vld [vmem:[%s0 + $0x38] sm:$0xff]
  %v52 = vld [vmem:[%s1] sm:$0xff]
  %v53 = vld [vmem:[%s1 + $0x8] sm:$0xff]
  %v54 = vld [vmem:[%s1 + $0x10] sm:$0xff]
  %v55 = vld [vmem:[%s1 + $0x18] sm:$0xff]
  %v56 = vld [vmem:[%s1 + $0x20] sm:$0xff]
  %v57 = vld [vmem:[%s1 + $0x28] sm:$0xff]
  %v58 = vld [vmem:[%s1 + $0x30] sm:$0xff]
  %v59 = vld [vmem:[%s1 + $0x38] sm:$0xff]
  %v60 = vld [vmem:[%s3] sm:$0xff]
  %v61 = vld [vmem:[%s3 + $0x8] sm:$0xff]
  %v62 = vld [vmem:[%s3 + $0x10] sm:$0xff]
  %v63 = vld [vmem:[%s3 + $0x18] sm:$0x1]
  %v64 = vld [vmem:[%s4] sm:$0x1]
  %v66 = vlaneseq
  %v67 = vshrl.u32 %v66, 7
  %v68 = vsub.s32 0, %v67
  %v69 = vrot.slane %v64, %v68
  %vm71 = vcmask 203776
  %v73 = vsel %vm71, %v52, 0
  %v76 = vsel %vm71, %v53, 0
  %v79 = vsel %vm71, %v54, 0
  %v82 = vsel %vm71, %v55, 0
  %v85 = vsel %vm71, %v56, 0
  %v88 = vsel %vm71, %v57, 0
  %v91 = vsel %vm71, %v58, 0
  %v94 = vsel %vm71, %v59, 0
  %vm96 = vcmask 1040384
  %v98 = vsel %vm96, %v63, 0
  %100 = vmatprep.subr.mxu0 0.0
  %101 = vmatpush1.msra.mxu0 %v60
  %102 = vmatprep.subr.mxu0 0.0
  %103 = vmatpush1.msra.mxu0 %v61
  %104 = vmatprep.subr.mxu0 0.0
  %105 = vmatpush1.msra.mxu0 %v62
  %106 = vmatprep.subr.mxu0 0.0
  %107 = vmatpush1.msra.mxu0 %v98
  %108 = vmatprep.subr.mxu0 0.0
  %109 = vmatpush1.msra.mxu0 0.0
  %110 = vmatprep.subr.mxu0 0.0
  %111 = vmatpush1.msra.mxu0 0.0
  %112 = vmatprep.subr.mxu0 0.0
  %113 = vmatpush1.msra.mxu0 0.0
  %114 = vmatprep.subr.mxu0 0.0
  %115 = vmatpush1.msra.mxu0 0.0
  %116 = vmatprep.subr.mxu0 0.0
  %117 = vmatpush1.msra.mxu0 0.0
  %118 = vmatprep.subr.mxu0 0.0
  %119 = vmatpush1.msra.mxu0 0.0
  %120 = vmatprep.subr.mxu0 0.0
  %121 = vmatpush1.msra.mxu0 0.0
  %122 = vmatprep.subr.mxu0 0.0
  %123 = vmatpush1.msra.mxu0 0.0
  %124 = vmatprep.subr.mxu0 0.0
  %125 = vmatpush1.msra.mxu0 0.0
  %126 = vmatprep.subr.mxu0 0.0
  %127 = vmatpush1.msra.mxu0 0.0
  %128 = vmatprep.subr.mxu0 0.0
  %129 = vmatpush1.msra.mxu0 0.0
  %130 = vmatprep.subr.mxu0 0.0
  %131 = vmatpush1.msra.mxu0 0.0
  %132 = vmatprep.subr.mxu0 0.0
  %133 = vmatpush1.msra.mxu0 0.0
  %134 = vmatprep.subr.mxu0 0.0
  %135 = vmatpush1.msra.mxu0 0.0
  %136 = vmatprep.subr.mxu0 0.0
  %137 = vmatpush1.msra.mxu0 0.0
  %138 = vmatprep.subr.mxu0 0.0
  %139 = vmatpush1.msra.mxu0 0.0
  %140 = vmatprep.subr.mxu0 0.0
  %141 = vmatpush1.msra.mxu0 0.0
  %142 = vmatprep.subr.mxu0 0.0
  %143 = vmatpush1.msra.mxu0 0.0
  %144 = vmatprep.subr.mxu0 0.0
  %145 = vmatpush1.msra.mxu0 0.0
  %146 = vmatprep.subr.mxu0 0.0
  %147 = vmatpush1.msra.mxu0 0.0
  %148 = vmatprep.subr.mxu0 0.0
  %149 = vmatpush1.msra.mxu0 0.0
  %150 = vmatprep.subr.mxu0 0.0
  %151 = vmatpush1.msra.mxu0 0.0
  %152 = vmatprep.subr.mxu0 0.0
  %153 = vmatpush1.msra.mxu0 0.0
  %154 = vmatprep.subr.mxu0 0.0
  %155 = vmatpush1.msra.mxu0 0.0
  %156 = vmatprep.subr.mxu0 0.0
  %157 = vmatpush1.msra.mxu0 0.0
  %158 = vmatprep.subr.mxu0 0.0
  %159 = vmatpush1.msra.mxu0 0.0
  %160 = vmatprep.subr.mxu0 0.0
  %161 = vmatpush1.msra.mxu0 0.0
  %162 = vmatprep.subr.mxu0 0.0
  %163 = vmatpush1.msra.mxu0 0.0
  %164 = vmatprep.mubr.f32.mxu0 0.0
  %165 = vmatmul.mubr.f32.gmra.mrb[0].mxu0 %v73
  %v166 = vpop.f32.mrb[0].mxu0
  %v167 = vadd.f32 %v69, %v166
  %v168 = vpop.f32.mrb[0].mxu0
  %169 = vmatprep.mubr.f32.mxu0 0.0
  %170 = vmatmul.mubr.f32.gmra.mrb[0].mxu0 %v76
  %v171 = vpop.f32.mrb[0].mxu0
  %v172 = vadd.f32 %v69, %v171
  %v173 = vpop.f32.mrb[0].mxu0
  %174 = vmatprep.mubr.f32.mxu0 0.0
  %175 = vmatmul.mubr.f32.gmra.mrb[0].mxu0 %v79
  %v176 = vpop.f32.mrb[0].mxu0
  %v177 = vadd.f32 %v69, %v176
  %v178 = vpop.f32.mrb[0].mxu0
  %179 = vmatprep.mubr.f32.mxu0 0.0
  %180 = vmatmul.mubr.f32.gmra.mrb[0].mxu0 %v82
  %v181 = vpop.f32.mrb[0].mxu0
  %v182 = vadd.f32 %v69, %v181
  %v183 = vpop.f32.mrb[0].mxu0
  %184 = vmatprep.mubr.f32.mxu0 0.0
  %185 = vmatmul.mubr.f32.gmra.mrb[0].mxu0 %v85
  %v186 = vpop.f32.mrb[0].mxu0
  %v187 = vadd.f32 %v69, %v186
  %v188 = vpop.f32.mrb[0].mxu0
  %189 = vmatprep.mubr.f32.mxu0 0.0
  %190 = vmatmul.mubr.f32.gmra.mrb[0].mxu0 %v88
  %v191 = vpop.f32.mrb[0].mxu0
  %v192 = vadd.f32 %v69, %v191
  %v193 = vpop.f32.mrb[0].mxu0
  %194 = vmatprep.mubr.f32.mxu0 0.0
  %195 = vmatmul.mubr.f32.gmra.mrb[0].mxu0 %v91
  %v196 = vpop.f32.mrb[0].mxu0
  %v197 = vadd.f32 %v69, %v196
  %v198 = vpop.f32.mrb[0].mxu0
  %199 = vmatprep.mubr.f32.mxu0 0.0
  %200 = vmatmul.mubr.f32.gmra.mrb[0].mxu0 %v94
  %v201 = vpop.f32.mrb[0].mxu0
  %v202 = vadd.f32 %v69, %v201
  %v203 = vpop.f32.mrb[0].mxu0
  %204 = vdwg.mxu0
  %v205 = vlaneseq
  %v206 = vand.u32 %v205, 127
  %v207 = vmul.u32 %v44, 32
  %v208 = vmul.u32 %v45, 32
  %v209 = vmul.u32 %v46, 32
  %v210 = vmul.u32 %v47, 32
  %v211 = vmul.u32 %v48, 32
  %v212 = vmul.u32 %v49, 32
  %v213 = vmul.u32 %v50, 32
  %v214 = vmul.u32 %v51, 32
  %215 = vset.pattern.permute.xlu0 0
  %216 = vperm.xlu0 %215, %v207
  %v217 = vpop.permute.xlu0 %216
  %218 = vset.pattern.permute.xlu0 0
  %219 = vperm.xlu0 %218, %v208
  %v220 = vpop.permute.xlu0 %219
  %221 = vset.pattern.permute.xlu0 0
  %222 = vperm.xlu0 %221, %v209
  %v223 = vpop.permute.xlu0 %222
  %224 = vset.pattern.permute.xlu0 0
  %225 = vperm.xlu0 %224, %v210
  %v226 = vpop.permute.xlu0 %225
  %227 = vset.pattern.permute.xlu0 0
  %228 = vperm.xlu0 %227, %v211
  %v229 = vpop.permute.xlu0 %228
  %230 = vset.pattern.permute.xlu0 0
  %231 = vperm.xlu0 %230, %v212
  %v232 = vpop.permute.xlu0 %231
  %233 = vset.pattern.permute.xlu0 0
  %234 = vperm.xlu0 %233, %v213
  %v235 = vpop.permute.xlu0 %234
  %236 = vset.pattern.permute.xlu0 0
  %237 = vperm.xlu0 %236, %v214
  %v238 = vpop.permute.xlu0 %237
  %vm239 = vcmp.ge.s32.totalorder %v206, %v217
  %vm240 = vcmp.ge.s32.totalorder %v206, %v220
  %vm241 = vcmp.ge.s32.totalorder %v206, %v223
  %vm242 = vcmp.ge.s32.totalorder %v206, %v226
  %vm243 = vcmp.ge.s32.totalorder %v206, %v229
  %vm244 = vcmp.ge.s32.totalorder %v206, %v232
  %vm245 = vcmp.ge.s32.totalorder %v206, %v235
  %vm246 = vcmp.ge.s32.totalorder %v206, %v238
  %v247 = vadd.s32 %v207, 32
  %v248 = vadd.s32 %v208, 32
  %v249 = vadd.s32 %v209, 32
  %v250 = vadd.s32 %v210, 32
  %v251 = vadd.s32 %v211, 32
  %v252 = vadd.s32 %v212, 32
  %v253 = vadd.s32 %v213, 32
  %v254 = vadd.s32 %v214, 32
  %255 = vset.pattern.permute.xlu0 0
  %256 = vperm.xlu0 %255, %v247
  %v257 = vpop.permute.xlu0 %256
  %258 = vset.pattern.permute.xlu0 0
  %259 = vperm.xlu0 %258, %v248
  %v260 = vpop.permute.xlu0 %259
  %261 = vset.pattern.permute.xlu0 0
  %262 = vperm.xlu0 %261, %v249
  %v263 = vpop.permute.xlu0 %262
  %264 = vset.pattern.permute.xlu0 0
  %265 = vperm.xlu0 %264, %v250
  %v266 = vpop.permute.xlu0 %265
  %267 = vset.pattern.permute.xlu0 0
  %268 = vperm.xlu0 %267, %v251
  %v269 = vpop.permute.xlu0 %268
  %270 = vset.pattern.permute.xlu0 0
  %271 = vperm.xlu0 %270, %v252
  %v272 = vpop.permute.xlu0 %271
  %273 = vset.pattern.permute.xlu0 0
  %274 = vperm.xlu0 %273, %v253
  %v275 = vpop.permute.xlu0 %274
  %276 = vset.pattern.permute.xlu0 0
  %277 = vperm.xlu0 %276, %v254
  %v278 = vpop.permute.xlu0 %277
  %vm279 = vcmp.lt.s32.totalorder %v206, %v257
  %vm280 = vcmp.lt.s32.totalorder %v206, %v260
  %vm281 = vcmp.lt.s32.totalorder %v206, %v263
  %vm282 = vcmp.lt.s32.totalorder %v206, %v266
  %vm283 = vcmp.lt.s32.totalorder %v206, %v269
  %vm284 = vcmp.lt.s32.totalorder %v206, %v272
  %vm285 = vcmp.lt.s32.totalorder %v206, %v275
  %vm286 = vcmp.lt.s32.totalorder %v206, %v278
  %vm287 = vmand %vm239, %vm279
  %vm288 = vmand %vm240, %vm280
  %vm289 = vmand %vm241, %vm281
  %vm290 = vmand %vm242, %vm282
  %vm291 = vmand %vm243, %vm283
  %vm292 = vmand %vm244, %vm284
  %vm293 = vmand %vm245, %vm285
  %vm294 = vmand %vm246, %vm286
  %v295 = vsel %vm287, %v167, 0.0
  %v296 = vsel %vm288, %v172, 0.0
  %v297 = vsel %vm289, %v177, 0.0
  %v298 = vsel %vm290, %v182, 0.0
  %v299 = vsel %vm291, %v187, 0.0
  %v300 = vsel %vm292, %v192, 0.0
  %v301 = vsel %vm293, %v197, 0.0
  %v302 = vsel %vm294, %v202, 0.0
  %311 = vrot.lane.b32.xlu0 %v295, 96
  %v312 = vpop.permute.xlu0 %311
  %313 = vrot.lane.b32.xlu0 %v296, 96
  %v314 = vpop.permute.xlu0 %313
  %315 = vrot.lane.b32.xlu0 %v297, 96
  %v316 = vpop.permute.xlu0 %315
  %317 = vrot.lane.b32.xlu0 %v298, 96
  %v318 = vpop.permute.xlu0 %317
  %319 = vrot.lane.b32.xlu0 %v299, 96
  %v320 = vpop.permute.xlu0 %319
  %321 = vrot.lane.b32.xlu0 %v300, 96
  %v322 = vpop.permute.xlu0 %321
  %323 = vrot.lane.b32.xlu0 %v301, 96
  %v324 = vpop.permute.xlu0 %323
  %325 = vrot.lane.b32.xlu0 %v302, 96
  %v326 = vpop.permute.xlu0 %325
  %v335 = vadd.f32 %v295, %v312
  %v336 = vadd.f32 %v296, %v314
  %v337 = vadd.f32 %v297, %v316
  %v338 = vadd.f32 %v298, %v318
  %v339 = vadd.f32 %v299, %v320
  %v340 = vadd.f32 %v300, %v322
  %v341 = vadd.f32 %v301, %v324
  %v342 = vadd.f32 %v302, %v326
  %343 = vrot.lane.b32.xlu0 %v295, 64
  %v344 = vpop.permute.xlu0 %343
  %345 = vrot.lane.b32.xlu0 %v296, 64
  %v346 = vpop.permute.xlu0 %345
  %347 = vrot.lane.b32.xlu0 %v297, 64
  %v348 = vpop.permute.xlu0 %347
  %349 = vrot.lane.b32.xlu0 %v298, 64
  %v350 = vpop.permute.xlu0 %349
  %351 = vrot.lane.b32.xlu0 %v299, 64
  %v352 = vpop.permute.xlu0 %351
  %353 = vrot.lane.b32.xlu0 %v300, 64
  %v354 = vpop.permute.xlu0 %353
  %355 = vrot.lane.b32.xlu0 %v301, 64
  %v356 = vpop.permute.xlu0 %355
  %357 = vrot.lane.b32.xlu0 %v302, 64
  %v358 = vpop.permute.xlu0 %357
  %v367 = vadd.f32 %v335, %v344
  %v368 = vadd.f32 %v336, %v346
  %v369 = vadd.f32 %v337, %v348
  %v370 = vadd.f32 %v338, %v350
  %v371 = vadd.f32 %v339, %v352
  %v372 = vadd.f32 %v340, %v354
  %v373 = vadd.f32 %v341, %v356
  %v374 = vadd.f32 %v342, %v358
  %375 = vrot.lane.b32.xlu0 %v295, 32
  %v376 = vpop.permute.xlu0 %375
  %377 = vrot.lane.b32.xlu0 %v296, 32
  %v378 = vpop.permute.xlu0 %377
  %379 = vrot.lane.b32.xlu0 %v297, 32
  %v380 = vpop.permute.xlu0 %379
  %381 = vrot.lane.b32.xlu0 %v298, 32
  %v382 = vpop.permute.xlu0 %381
  %383 = vrot.lane.b32.xlu0 %v299, 32
  %v384 = vpop.permute.xlu0 %383
  %385 = vrot.lane.b32.xlu0 %v300, 32
  %v386 = vpop.permute.xlu0 %385
  %387 = vrot.lane.b32.xlu0 %v301, 32
  %v388 = vpop.permute.xlu0 %387
  %389 = vrot.lane.b32.xlu0 %v302, 32
  %v390 = vpop.permute.xlu0 %389
  %v399 = vadd.f32 %v367, %v376
  %v400 = vadd.f32 %v368, %v378
  %v401 = vadd.f32 %v369, %v380
  %v402 = vadd.f32 %v370, %v382
  %v403 = vadd.f32 %v371, %v384
  %v404 = vadd.f32 %v372, %v386
  %v405 = vadd.f32 %v373, %v388
  %v406 = vadd.f32 %v374, %v390
  %v407 = vmax.f32 %v399, 0.0
  %v408 = vmax.f32 %v400, 0.0
  %v409 = vmax.f32 %v401, 0.0
  %v410 = vmax.f32 %v402, 0.0
  %v411 = vmax.f32 %v403, 0.0
  %v412 = vmax.f32 %v404, 0.0
  %v413 = vmax.f32 %v405, 0.0
  %v414 = vmax.f32 %v406, 0.0
  %v415 = vld [vmem:[%s5] sm:$0xff]
  %v416 = vld [vmem:[%s5 + $0x8] sm:$0xff]
  %v417 = vld [vmem:[%s5 + $0x10] sm:$0xff]
  %v418 = vld [vmem:[%s5 + $0x18] sm:$0xff]
  %v419 = vld [vmem:[%s5 + $0x20] sm:$0xff]
  %v420 = vld [vmem:[%s5 + $0x28] sm:$0xff]
  %v421 = vld [vmem:[%s5 + $0x30] sm:$0xff]
  %v422 = vld [vmem:[%s5 + $0x38] sm:$0x1]
  %v424 = vsel %vm96, %v422, 0
  %426 = vmatprep.subr.mxu0 0.0
  %427 = vmatpush1.msra.mxu0 %v419
  %428 = vmatprep.subr.mxu0 0.0
  %429 = vmatpush1.msra.mxu0 %v420
  %430 = vmatprep.subr.mxu0 0.0
  %431 = vmatpush1.msra.mxu0 %v421
  %432 = vmatprep.subr.mxu0 0.0
  %433 = vmatpush1.msra.mxu0 %v424
  %434 = vmatprep.subr.mxu0 0.0
  %435 = vmatpush1.msra.mxu0 0.0
  %436 = vmatprep.subr.mxu0 0.0
  %437 = vmatpush1.msra.mxu0 0.0
  %438 = vmatprep.subr.mxu0 0.0
  %439 = vmatpush1.msra.mxu0 0.0
  %440 = vmatprep.subr.mxu0 0.0
  %441 = vmatpush1.msra.mxu0 0.0
  %442 = vmatprep.subr.mxu0 0.0
  %443 = vmatpush1.msra.mxu0 0.0
  %444 = vmatprep.subr.mxu0 0.0
  %445 = vmatpush1.msra.mxu0 0.0
  %446 = vmatprep.subr.mxu0 0.0
  %447 = vmatpush1.msra.mxu0 0.0
  %448 = vmatprep.subr.mxu0 0.0
  %449 = vmatpush1.msra.mxu0 0.0
  %450 = vmatprep.subr.mxu0 0.0
  %451 = vmatpush1.msra.mxu0 0.0
  %452 = vmatprep.subr.mxu0 0.0
  %453 = vmatpush1.msra.mxu0 0.0
  %454 = vmatprep.subr.mxu0 0.0
  %455 = vmatpush1.msra.mxu0 0.0
  %456 = vmatprep.subr.mxu0 0.0
  %457 = vmatpush1.msra.mxu0 0.0
  %458 = vmatprep.subr.mxu0 0.0
  %459 = vmatpush1.msra.mxu0 0.0
  %460 = vmatprep.subr.mxu0 0.0
  %461 = vmatpush1.msra.mxu0 0.0
  %462 = vmatprep.subr.mxu0 0.0
  %463 = vmatpush1.msra.mxu0 0.0
  %464 = vmatprep.subr.mxu0 0.0
  %465 = vmatpush1.msra.mxu0 0.0
  %466 = vmatprep.subr.mxu0 0.0
  %467 = vmatpush1.msra.mxu0 0.0
  %468 = vmatprep.subr.mxu0 0.0
  %469 = vmatpush1.msra.mxu0 0.0
  %470 = vmatprep.subr.mxu0 0.0
  %471 = vmatpush1.msra.mxu0 0.0
  %472 = vmatprep.subr.mxu0 0.0
  %473 = vmatpush1.msra.mxu0 0.0
  %474 = vmatprep.subr.mxu0 0.0
  %475 = vmatpush1.msra.mxu0 0.0
  %476 = vmatprep.subr.mxu0 0.0
  %477 = vmatpush1.msra.mxu0 0.0
  %478 = vmatprep.subr.mxu0 0.0
  %479 = vmatpush1.msra.mxu0 0.0
  %480 = vmatprep.subr.mxu0 0.0
  %481 = vmatpush1.msra.mxu0 0.0
  %482 = vmatprep.subr.mxu0 0.0
  %483 = vmatpush1.msra.mxu0 0.0
  %484 = vmatprep.subr.mxu0 0.0
  %485 = vmatpush1.msra.mxu0 0.0
  %486 = vmatprep.subr.mxu0 0.0
  %487 = vmatpush1.msra.mxu0 0.0
  %488 = vmatprep.subr.mxu0 0.0
  %489 = vmatpush1.msra.mxu0 0.0
  %490 = vmatprep.mubr.f32.mxu0 0.0
  %491 = vmatmul.mubr.f32.gmra.mrb[0].mxu0 %v73
  %v492 = vpop.f32.mrb[0].mxu0
  %v493 = vadd.f32 0.0, %v492
  %v494 = vpop.f32.mrb[0].mxu0
  %495 = vmatprep.mubr.f32.mxu0 0.0
  %496 = vmatmul.mubr.f32.gmra.mrb[0].mxu0 %v76
  %v497 = vpop.f32.mrb[0].mxu0
  %v498 = vadd.f32 0.0, %v497
  %v499 = vpop.f32.mrb[0].mxu0
  %500 = vmatprep.mubr.f32.mxu0 0.0
  %501 = vmatmul.mubr.f32.gmra.mrb[0].mxu0 %v79
  %v502 = vpop.f32.mrb[0].mxu0
  %v503 = vadd.f32 0.0, %v502
  %v504 = vpop.f32.mrb[0].mxu0
  %505 = vmatprep.mubr.f32.mxu0 0.0
  %506 = vmatmul.mubr.f32.gmra.mrb[0].mxu0 %v82
  %v507 = vpop.f32.mrb[0].mxu0
  %v508 = vadd.f32 0.0, %v507
  %v509 = vpop.f32.mrb[0].mxu0
  %510 = vmatprep.mubr.f32.mxu0 0.0
  %511 = vmatmul.mubr.f32.gmra.mrb[0].mxu0 %v85
  %v512 = vpop.f32.mrb[0].mxu0
  %v513 = vadd.f32 0.0, %v512
  %v514 = vpop.f32.mrb[0].mxu0
  %515 = vmatprep.mubr.f32.mxu0 0.0
  %516 = vmatmul.mubr.f32.gmra.mrb[0].mxu0 %v88
  %v517 = vpop.f32.mrb[0].mxu0
  %v518 = vadd.f32 0.0, %v517
  %v519 = vpop.f32.mrb[0].mxu0
  %520 = vmatprep.mubr.f32.mxu0 0.0
  %521 = vmatmul.mubr.f32.gmra.mrb[0].mxu0 %v91
  %v522 = vpop.f32.mrb[0].mxu0
  %v523 = vadd.f32 0.0, %v522
  %v524 = vpop.f32.mrb[0].mxu0
  %525 = vmatprep.mubr.f32.mxu0 0.0
  %526 = vmatmul.mubr.f32.gmra.mrb[0].mxu0 %v94
  %v527 = vpop.f32.mrb[0].mxu0
  %v528 = vadd.f32 0.0, %v527
  %v529 = vpop.f32.mrb[0].mxu0
  %530 = vdwg.mxu0
  %vm531 = vcmask 261120
  %v533 = vsel %vm531, %v407, 0
  %v536 = vsel %vm531, %v408, 0
  %v539 = vsel %vm531, %v409, 0
  %v542 = vsel %vm531, %v410, 0
  %v545 = vsel %vm531, %v411, 0
  %v548 = vsel %vm531, %v412, 0
  %v551 = vsel %vm531, %v413, 0
  %v554 = vsel %vm531, %v414, 0
  %556 = vmatprep.subr.mxu0 0.0
  %557 = vmatpush1.msra.mxu0 %v415
  %558 = vmatprep.subr.mxu0 0.0
  %559 = vmatpush1.msra.mxu0 %v416
  %560 = vmatprep.subr.mxu0 0.0
  %561 = vmatpush1.msra.mxu0 %v417
  %562 = vmatprep.subr.mxu0 0.0
  %563 = vmatpush1.msra.mxu0 %v418
  %564 = vmatprep.subr.mxu0 0.0
  %565 = vmatpush1.msra.mxu0 0.0
  %566 = vmatprep.subr.mxu0 0.0
  %567 = vmatpush1.msra.mxu0 0.0
  %568 = vmatprep.subr.mxu0 0.0
  %569 = vmatpush1.msra.mxu0 0.0
  %570 = vmatprep.subr.mxu0 0.0
  %571 = vmatpush1.msra.mxu0 0.0
  %572 = vmatprep.subr.mxu0 0.0
  %573 = vmatpush1.msra.mxu0 0.0
  %574 = vmatprep.subr.mxu0 0.0
  %575 = vmatpush1.msra.mxu0 0.0
  %576 = vmatprep.subr.mxu0 0.0
  %577 = vmatpush1.msra.mxu0 0.0
  %578 = vmatprep.subr.mxu0 0.0
  %579 = vmatpush1.msra.mxu0 0.0
  %580 = vmatprep.subr.mxu0 0.0
  %581 = vmatpush1.msra.mxu0 0.0
  %582 = vmatprep.subr.mxu0 0.0
  %583 = vmatpush1.msra.mxu0 0.0
  %584 = vmatprep.subr.mxu0 0.0
  %585 = vmatpush1.msra.mxu0 0.0
  %586 = vmatprep.subr.mxu0 0.0
  %587 = vmatpush1.msra.mxu0 0.0
  %588 = vmatprep.subr.mxu0 0.0
  %589 = vmatpush1.msra.mxu0 0.0
  %590 = vmatprep.subr.mxu0 0.0
  %591 = vmatpush1.msra.mxu0 0.0
  %592 = vmatprep.subr.mxu0 0.0
  %593 = vmatpush1.msra.mxu0 0.0
  %594 = vmatprep.subr.mxu0 0.0
  %595 = vmatpush1.msra.mxu0 0.0
  %596 = vmatprep.subr.mxu0 0.0
  %597 = vmatpush1.msra.mxu0 0.0
  %598 = vmatprep.subr.mxu0 0.0
  %599 = vmatpush1.msra.mxu0 0.0
  %600 = vmatprep.subr.mxu0 0.0
  %601 = vmatpush1.msra.mxu0 0.0
  %602 = vmatprep.subr.mxu0 0.0
  %603 = vmatpush1.msra.mxu0 0.0
  %604 = vmatprep.subr.mxu0 0.0
  %605 = vmatpush1.msra.mxu0 0.0
  %606 = vmatprep.subr.mxu0 0.0
  %607 = vmatpush1.msra.mxu0 0.0
  %608 = vmatprep.subr.mxu0 0.0
  %609 = vmatpush1.msra.mxu0 0.0
  %610 = vmatprep.subr.mxu0 0.0
  %611 = vmatpush1.msra.mxu0 0.0
  %612 = vmatprep.subr.mxu0 0.0
  %613 = vmatpush1.msra.mxu0 0.0
  %614 = vmatprep.subr.mxu0 0.0
  %615 = vmatpush1.msra.mxu0 0.0
  %616 = vmatprep.subr.mxu0 0.0
  %617 = vmatpush1.msra.mxu0 0.0
  %618 = vmatprep.subr.mxu0 0.0
  %619 = vmatpush1.msra.mxu0 0.0
  %620 = vmatprep.mubr.f32.mxu0 0.0
  %621 = vmatmul.mubr.f32.gmra.mrb[0].mxu0 %v533
  %v622 = vpop.f32.mrb[0].mxu0
  %v623 = vadd.f32 %v493, %v622
  %v624 = vpop.f32.mrb[0].mxu0
  %625 = vmatprep.mubr.f32.mxu0 0.0
  %626 = vmatmul.mubr.f32.gmra.mrb[0].mxu0 %v536
  %v627 = vpop.f32.mrb[0].mxu0
  %v628 = vadd.f32 %v498, %v627
  %v629 = vpop.f32.mrb[0].mxu0
  %630 = vmatprep.mubr.f32.mxu0 0.0
  %631 = vmatmul.mubr.f32.gmra.mrb[0].mxu0 %v539
  %v632 = vpop.f32.mrb[0].mxu0
  %v633 = vadd.f32 %v503, %v632
  %v634 = vpop.f32.mrb[0].mxu0
  %635 = vmatprep.mubr.f32.mxu0 0.0
  %636 = vmatmul.mubr.f32.gmra.mrb[0].mxu0 %v542
  %v637 = vpop.f32.mrb[0].mxu0
  %v638 = vadd.f32 %v508, %v637
  %v639 = vpop.f32.mrb[0].mxu0
  %640 = vmatprep.mubr.f32.mxu0 0.0
  %641 = vmatmul.mubr.f32.gmra.mrb[0].mxu0 %v545
  %v642 = vpop.f32.mrb[0].mxu0
  %v643 = vadd.f32 %v513, %v642
  %v644 = vpop.f32.mrb[0].mxu0
  %645 = vmatprep.mubr.f32.mxu0 0.0
  %646 = vmatmul.mubr.f32.gmra.mrb[0].mxu0 %v548
  %v647 = vpop.f32.mrb[0].mxu0
  %v648 = vadd.f32 %v518, %v647
  %v649 = vpop.f32.mrb[0].mxu0
  %650 = vmatprep.mubr.f32.mxu0 0.0
  %651 = vmatmul.mubr.f32.gmra.mrb[0].mxu0 %v551
  %v652 = vpop.f32.mrb[0].mxu0
  %v653 = vadd.f32 %v523, %v652
  %v654 = vpop.f32.mrb[0].mxu0
  %655 = vmatprep.mubr.f32.mxu0 0.0
  %656 = vmatmul.mubr.f32.gmra.mrb[0].mxu0 %v554
  %v657 = vpop.f32.mrb[0].mxu0
  %v658 = vadd.f32 %v528, %v657
  %v659 = vpop.f32.mrb[0].mxu0
  %660 = vdwg.mxu0
  %v661 = vld [vmem:[%s6] sm:$0x1]
  %v663 = vlaneseq
  %v664 = vshrl.u32 %v663, 7
  %v665 = vsub.s32 0, %v664
  %v666 = vrot.slane %v661, %v665
  %v668 = vadd.f32 %v623, %v666
  %v669 = vadd.f32 %v628, %v666
  %v670 = vadd.f32 %v633, %v666
  %v671 = vadd.f32 %v638, %v666
  %v672 = vadd.f32 %v643, %v666
  %v673 = vadd.f32 %v648, %v666
  %v674 = vadd.f32 %v653, %v666
  %v675 = vadd.f32 %v658, %v666
  %v676 = vsel %vm287, %v668, 0.0
  %v677 = vsel %vm288, %v669, 0.0
  %v678 = vsel %vm289, %v670, 0.0
  %v679 = vsel %vm290, %v671, 0.0
  %v680 = vsel %vm291, %v672, 0.0
  %v681 = vsel %vm292, %v673, 0.0
  %v682 = vsel %vm293, %v674, 0.0
  %v683 = vsel %vm294, %v675, 0.0
  %692 = vrot.lane.b32.xlu0 %v676, 96
  %v693 = vpop.permute.xlu0 %692
  %694 = vrot.lane.b32.xlu0 %v677, 96
  %v695 = vpop.permute.xlu0 %694
  %696 = vrot.lane.b32.xlu0 %v678, 96
  %v697 = vpop.permute.xlu0 %696
  %698 = vrot.lane.b32.xlu0 %v679, 96
  %v699 = vpop.permute.xlu0 %698
  %700 = vrot.lane.b32.xlu0 %v680, 96
  %v701 = vpop.permute.xlu0 %700
  %702 = vrot.lane.b32.xlu0 %v681, 96
  %v703 = vpop.permute.xlu0 %702
  %704 = vrot.lane.b32.xlu0 %v682, 96
  %v705 = vpop.permute.xlu0 %704
  %706 = vrot.lane.b32.xlu0 %v683, 96
  %v707 = vpop.permute.xlu0 %706
  %v716 = vadd.f32 %v676, %v693
  %v717 = vadd.f32 %v677, %v695
  %v718 = vadd.f32 %v678, %v697
  %v719 = vadd.f32 %v679, %v699
  %v720 = vadd.f32 %v680, %v701
  %v721 = vadd.f32 %v681, %v703
  %v722 = vadd.f32 %v682, %v705
  %v723 = vadd.f32 %v683, %v707
  %724 = vrot.lane.b32.xlu0 %v676, 64
  %v725 = vpop.permute.xlu0 %724
  %726 = vrot.lane.b32.xlu0 %v677, 64
  %v727 = vpop.permute.xlu0 %726
  %728 = vrot.lane.b32.xlu0 %v678, 64
  %v729 = vpop.permute.xlu0 %728
  %730 = vrot.lane.b32.xlu0 %v679, 64
  %v731 = vpop.permute.xlu0 %730
  %732 = vrot.lane.b32.xlu0 %v680, 64
  %v733 = vpop.permute.xlu0 %732
  %734 = vrot.lane.b32.xlu0 %v681, 64
  %v735 = vpop.permute.xlu0 %734
  %736 = vrot.lane.b32.xlu0 %v682, 64
  %v737 = vpop.permute.xlu0 %736
  %738 = vrot.lane.b32.xlu0 %v683, 64
  %v739 = vpop.permute.xlu0 %738
  %v748 = vadd.f32 %v716, %v725
  %v749 = vadd.f32 %v717, %v727
  %v750 = vadd.f32 %v718, %v729
  %v751 = vadd.f32 %v719, %v731
  %v752 = vadd.f32 %v720, %v733
  %v753 = vadd.f32 %v721, %v735
  %v754 = vadd.f32 %v722, %v737
  %v755 = vadd.f32 %v723, %v739
  %756 = vrot.lane.b32.xlu0 %v676, 32
  %v757 = vpop.permute.xlu0 %756
  %758 = vrot.lane.b32.xlu0 %v677, 32
  %v759 = vpop.permute.xlu0 %758
  %760 = vrot.lane.b32.xlu0 %v678, 32
  %v761 = vpop.permute.xlu0 %760
  %762 = vrot.lane.b32.xlu0 %v679, 32
  %v763 = vpop.permute.xlu0 %762
  %764 = vrot.lane.b32.xlu0 %v680, 32
  %v765 = vpop.permute.xlu0 %764
  %766 = vrot.lane.b32.xlu0 %v681, 32
  %v767 = vpop.permute.xlu0 %766
  %768 = vrot.lane.b32.xlu0 %v682, 32
  %v769 = vpop.permute.xlu0 %768
  %770 = vrot.lane.b32.xlu0 %v683, 32
  %v771 = vpop.permute.xlu0 %770
  %v780 = vadd.f32 %v748, %v757
  %v781 = vadd.f32 %v749, %v759
  %v782 = vadd.f32 %v750, %v761
  %v783 = vadd.f32 %v751, %v763
  %v784 = vadd.f32 %v752, %v765
  %v785 = vadd.f32 %v753, %v767
  %v786 = vadd.f32 %v754, %v769
  %v787 = vadd.f32 %v755, %v771
  %v788 = vmax.f32 %v780, 0.0
  %v789 = vmax.f32 %v781, 0.0
  %v790 = vmax.f32 %v782, 0.0
  %v791 = vmax.f32 %v783, 0.0
  %v792 = vmax.f32 %v784, 0.0
  %v793 = vmax.f32 %v785, 0.0
  %v794 = vmax.f32 %v786, 0.0
  %v795 = vmax.f32 %v787, 0.0
  %v796 = vld [vmem:[%s7] sm:$0xff]
  %v797 = vld [vmem:[%s7 + $0x8] sm:$0xff]
  %v798 = vld [vmem:[%s7 + $0x10] sm:$0xff]
  %v799 = vld [vmem:[%s7 + $0x18] sm:$0xff]
  %v800 = vld [vmem:[%s8] sm:$0x1]
  %v802 = vlaneseq
  %v803 = vshrl.u32 %v802, 7
  %v804 = vsub.s32 0, %v803
  %v805 = vrot.slane %v800, %v804
  %v808 = vsel %vm531, %v788, 0
  %v811 = vsel %vm531, %v789, 0
  %v814 = vsel %vm531, %v790, 0
  %v817 = vsel %vm531, %v791, 0
  %v820 = vsel %vm531, %v792, 0
  %v823 = vsel %vm531, %v793, 0
  %v826 = vsel %vm531, %v794, 0
  %v829 = vsel %vm531, %v795, 0
  %831 = vmatprep.subr.mxu0 0.0
  %832 = vmatpush1.msra.mxu0 %v796
  %833 = vmatprep.subr.mxu0 0.0
  %834 = vmatpush1.msra.mxu0 %v797
  %835 = vmatprep.subr.mxu0 0.0
  %836 = vmatpush1.msra.mxu0 %v798
  %837 = vmatprep.subr.mxu0 0.0
  %838 = vmatpush1.msra.mxu0 %v799
  %839 = vmatprep.subr.mxu0 0.0
  %840 = vmatpush1.msra.mxu0 0.0
  %841 = vmatprep.subr.mxu0 0.0
  %842 = vmatpush1.msra.mxu0 0.0
  %843 = vmatprep.subr.mxu0 0.0
  %844 = vmatpush1.msra.mxu0 0.0
  %845 = vmatprep.subr.mxu0 0.0
  %846 = vmatpush1.msra.mxu0 0.0
  %847 = vmatprep.subr.mxu0 0.0
  %848 = vmatpush1.msra.mxu0 0.0
  %849 = vmatprep.subr.mxu0 0.0
  %850 = vmatpush1.msra.mxu0 0.0
  %851 = vmatprep.subr.mxu0 0.0
  %852 = vmatpush1.msra.mxu0 0.0
  %853 = vmatprep.subr.mxu0 0.0
  %854 = vmatpush1.msra.mxu0 0.0
  %855 = vmatprep.subr.mxu0 0.0
  %856 = vmatpush1.msra.mxu0 0.0
  %857 = vmatprep.subr.mxu0 0.0
  %858 = vmatpush1.msra.mxu0 0.0
  %859 = vmatprep.subr.mxu0 0.0
  %860 = vmatpush1.msra.mxu0 0.0
  %861 = vmatprep.subr.mxu0 0.0
  %862 = vmatpush1.msra.mxu0 0.0
  %863 = vmatprep.subr.mxu0 0.0
  %864 = vmatpush1.msra.mxu0 0.0
  %865 = vmatprep.subr.mxu0 0.0
  %866 = vmatpush1.msra.mxu0 0.0
  %867 = vmatprep.subr.mxu0 0.0
  %868 = vmatpush1.msra.mxu0 0.0
  %869 = vmatprep.subr.mxu0 0.0
  %870 = vmatpush1.msra.mxu0 0.0
  %871 = vmatprep.subr.mxu0 0.0
  %872 = vmatpush1.msra.mxu0 0.0
  %873 = vmatprep.subr.mxu0 0.0
  %874 = vmatpush1.msra.mxu0 0.0
  %875 = vmatprep.subr.mxu0 0.0
  %876 = vmatpush1.msra.mxu0 0.0
  %877 = vmatprep.subr.mxu0 0.0
  %878 = vmatpush1.msra.mxu0 0.0
  %879 = vmatprep.subr.mxu0 0.0
  %880 = vmatpush1.msra.mxu0 0.0
  %881 = vmatprep.subr.mxu0 0.0
  %882 = vmatpush1.msra.mxu0 0.0
  %883 = vmatprep.subr.mxu0 0.0
  %884 = vmatpush1.msra.mxu0 0.0
  %885 = vmatprep.subr.mxu0 0.0
  %886 = vmatpush1.msra.mxu0 0.0
  %887 = vmatprep.subr.mxu0 0.0
  %888 = vmatpush1.msra.mxu0 0.0
  %889 = vmatprep.subr.mxu0 0.0
  %890 = vmatpush1.msra.mxu0 0.0
  %891 = vmatprep.subr.mxu0 0.0
  %892 = vmatpush1.msra.mxu0 0.0
  %893 = vmatprep.subr.mxu0 0.0
  %894 = vmatpush1.msra.mxu0 0.0
  %895 = vmatprep.mubr.f32.mxu0 0.0
  %896 = vmatmul.mubr.f32.gmra.mrb[0].mxu0 %v808
  %v897 = vpop.f32.mrb[0].mxu0
  %v898 = vadd.f32 %v805, %v897
  %v899 = vpop.f32.mrb[0].mxu0
  %900 = vmatprep.mubr.f32.mxu0 0.0
  %901 = vmatmul.mubr.f32.gmra.mrb[0].mxu0 %v811
  %v902 = vpop.f32.mrb[0].mxu0
  %v903 = vadd.f32 %v805, %v902
  %v904 = vpop.f32.mrb[0].mxu0
  %905 = vmatprep.mubr.f32.mxu0 0.0
  %906 = vmatmul.mubr.f32.gmra.mrb[0].mxu0 %v814
  %v907 = vpop.f32.mrb[0].mxu0
  %v908 = vadd.f32 %v805, %v907
  %v909 = vpop.f32.mrb[0].mxu0
  %910 = vmatprep.mubr.f32.mxu0 0.0
  %911 = vmatmul.mubr.f32.gmra.mrb[0].mxu0 %v817
  %v912 = vpop.f32.mrb[0].mxu0
  %v913 = vadd.f32 %v805, %v912
  %v914 = vpop.f32.mrb[0].mxu0
  %915 = vmatprep.mubr.f32.mxu0 0.0
  %916 = vmatmul.mubr.f32.gmra.mrb[0].mxu0 %v820
  %v917 = vpop.f32.mrb[0].mxu0
  %v918 = vadd.f32 %v805, %v917
  %v919 = vpop.f32.mrb[0].mxu0
  %920 = vmatprep.mubr.f32.mxu0 0.0
  %921 = vmatmul.mubr.f32.gmra.mrb[0].mxu0 %v823
  %v922 = vpop.f32.mrb[0].mxu0
  %v923 = vadd.f32 %v805, %v922
  %v924 = vpop.f32.mrb[0].mxu0
  %925 = vmatprep.mubr.f32.mxu0 0.0
  %926 = vmatmul.mubr.f32.gmra.mrb[0].mxu0 %v826
  %v927 = vpop.f32.mrb[0].mxu0
  %v928 = vadd.f32 %v805, %v927
  %v929 = vpop.f32.mrb[0].mxu0
  %930 = vmatprep.mubr.f32.mxu0 0.0
  %931 = vmatmul.mubr.f32.gmra.mrb[0].mxu0 %v829
  %v932 = vpop.f32.mrb[0].mxu0
  %v933 = vadd.f32 %v805, %v932
  %v934 = vpop.f32.mrb[0].mxu0
  %935 = vdwg.mxu0
  %v936 = vsel %vm287, %v898, 0.0
  %v937 = vsel %vm288, %v903, 0.0
  %v938 = vsel %vm289, %v908, 0.0
  %v939 = vsel %vm290, %v913, 0.0
  %v940 = vsel %vm291, %v918, 0.0
  %v941 = vsel %vm292, %v923, 0.0
  %v942 = vsel %vm293, %v928, 0.0
  %v943 = vsel %vm294, %v933, 0.0
  %952 = vrot.lane.b32.xlu0 %v936, 96
  %v953 = vpop.permute.xlu0 %952
  %954 = vrot.lane.b32.xlu0 %v937, 96
  %v955 = vpop.permute.xlu0 %954
  %956 = vrot.lane.b32.xlu0 %v938, 96
  %v957 = vpop.permute.xlu0 %956
  %958 = vrot.lane.b32.xlu0 %v939, 96
  %v959 = vpop.permute.xlu0 %958
  %960 = vrot.lane.b32.xlu0 %v940, 96
  %v961 = vpop.permute.xlu0 %960
  %962 = vrot.lane.b32.xlu0 %v941, 96
  %v963 = vpop.permute.xlu0 %962
  %964 = vrot.lane.b32.xlu0 %v942, 96
  %v965 = vpop.permute.xlu0 %964
  %966 = vrot.lane.b32.xlu0 %v943, 96
  %v967 = vpop.permute.xlu0 %966
  %v976 = vadd.f32 %v936, %v953
  %v977 = vadd.f32 %v937, %v955
  %v978 = vadd.f32 %v938, %v957
  %v979 = vadd.f32 %v939, %v959
  %v980 = vadd.f32 %v940, %v961
  %v981 = vadd.f32 %v941, %v963
  %v982 = vadd.f32 %v942, %v965
  %v983 = vadd.f32 %v943, %v967
  %984 = vrot.lane.b32.xlu0 %v936, 64
  %v985 = vpop.permute.xlu0 %984
  %986 = vrot.lane.b32.xlu0 %v937, 64
  %v987 = vpop.permute.xlu0 %986
  %988 = vrot.lane.b32.xlu0 %v938, 64
  %v989 = vpop.permute.xlu0 %988
  %990 = vrot.lane.b32.xlu0 %v939, 64
  %v991 = vpop.permute.xlu0 %990
  %992 = vrot.lane.b32.xlu0 %v940, 64
  %v993 = vpop.permute.xlu0 %992
  %994 = vrot.lane.b32.xlu0 %v941, 64
  %v995 = vpop.permute.xlu0 %994
  %996 = vrot.lane.b32.xlu0 %v942, 64
  %v997 = vpop.permute.xlu0 %996
  %998 = vrot.lane.b32.xlu0 %v943, 64
  %v999 = vpop.permute.xlu0 %998
  %v1008 = vadd.f32 %v976, %v985
  %v1009 = vadd.f32 %v977, %v987
  %v1010 = vadd.f32 %v978, %v989
  %v1011 = vadd.f32 %v979, %v991
  %v1012 = vadd.f32 %v980, %v993
  %v1013 = vadd.f32 %v981, %v995
  %v1014 = vadd.f32 %v982, %v997
  %v1015 = vadd.f32 %v983, %v999
  %1016 = vrot.lane.b32.xlu0 %v936, 32
  %v1017 = vpop.permute.xlu0 %1016
  %1018 = vrot.lane.b32.xlu0 %v937, 32
  %v1019 = vpop.permute.xlu0 %1018
  %1020 = vrot.lane.b32.xlu0 %v938, 32
  %v1021 = vpop.permute.xlu0 %1020
  %1022 = vrot.lane.b32.xlu0 %v939, 32
  %v1023 = vpop.permute.xlu0 %1022
  %1024 = vrot.lane.b32.xlu0 %v940, 32
  %v1025 = vpop.permute.xlu0 %1024
  %1026 = vrot.lane.b32.xlu0 %v941, 32
  %v1027 = vpop.permute.xlu0 %1026
  %1028 = vrot.lane.b32.xlu0 %v942, 32
  %v1029 = vpop.permute.xlu0 %1028
  %1030 = vrot.lane.b32.xlu0 %v943, 32
  %v1031 = vpop.permute.xlu0 %1030
  %v1040 = vadd.f32 %v1008, %v1017
  %v1041 = vadd.f32 %v1009, %v1019
  %v1042 = vadd.f32 %v1010, %v1021
  %v1043 = vadd.f32 %v1011, %v1023
  %v1044 = vadd.f32 %v1012, %v1025
  %v1045 = vadd.f32 %v1013, %v1027
  %v1046 = vadd.f32 %v1014, %v1029
  %v1047 = vadd.f32 %v1015, %v1031
  %v1048 = vmax.f32 %v1040, 0.0
  %v1049 = vmax.f32 %v1041, 0.0
  %v1050 = vmax.f32 %v1042, 0.0
  %v1051 = vmax.f32 %v1043, 0.0
  %v1052 = vmax.f32 %v1044, 0.0
  %v1053 = vmax.f32 %v1045, 0.0
  %v1054 = vmax.f32 %v1046, 0.0
  %v1055 = vmax.f32 %v1047, 0.0
  %v1056 = vld [vmem:[%s9] sm:$0xff]
  %v1057 = vld [vmem:[%s9 + $0x8] sm:$0xff]
  %v1058 = vld [vmem:[%s9 + $0x10] sm:$0xff]
  %v1059 = vld [vmem:[%s9 + $0x18] sm:$0xff]
  %v1060 = vld [vmem:[%s9 + $0x20] sm:$0xff]
  %v1061 = vld [vmem:[%s9 + $0x28] sm:$0xff]
  %v1062 = vld [vmem:[%s9 + $0x30] sm:$0xff]
  %v1063 = vld [vmem:[%s9 + $0x38] sm:$0xff]
  %v1064 = vld [vmem:[%s10] sm:$0x3]
  %v1066 = vlaneseq
  %v1067 = vshrl.u32 %v1066, 7
  %v1068 = vsub.s32 0, %v1067
  %v1069 = vrot.slane %v1064, %v1068
  %v1070 = vlaneseq
  %v1071 = vshrl.u32 %v1070, 7
  %v1072 = vsub.s32 1, %v1071
  %v1073 = vrot.slane %v1064, %v1072
  %v1077 = vsel %vm531, %v1048, 0
  %v1080 = vsel %vm531, %v1049, 0
  %v1083 = vsel %vm531, %v1050, 0
  %v1086 = vsel %vm531, %v1051, 0
  %v1089 = vsel %vm531, %v1052, 0
  %v1092 = vsel %vm531, %v1053, 0
  %v1095 = vsel %vm531, %v1054, 0
  %v1098 = vsel %vm531, %v1055, 0
  %1100 = vmatprep.subr.mxu0 %v1057
  %1101 = vmatpush1.msra.mxu0 %v1056
  %1102 = vmatprep.subr.mxu0 %v1059
  %1103 = vmatpush1.msra.mxu0 %v1058
  %1104 = vmatprep.subr.mxu0 %v1061
  %1105 = vmatpush1.msra.mxu0 %v1060
  %1106 = vmatprep.subr.mxu0 %v1063
  %1107 = vmatpush1.msra.mxu0 %v1062
  %1108 = vmatprep.subr.mxu0 0.0
  %1109 = vmatpush1.msra.mxu0 0.0
  %1110 = vmatprep.subr.mxu0 0.0
  %1111 = vmatpush1.msra.mxu0 0.0
  %1112 = vmatprep.subr.mxu0 0.0
  %1113 = vmatpush1.msra.mxu0 0.0
  %1114 = vmatprep.subr.mxu0 0.0
  %1115 = vmatpush1.msra.mxu0 0.0
  %1116 = vmatprep.subr.mxu0 0.0
  %1117 = vmatpush1.msra.mxu0 0.0
  %1118 = vmatprep.subr.mxu0 0.0
  %1119 = vmatpush1.msra.mxu0 0.0
  %1120 = vmatprep.subr.mxu0 0.0
  %1121 = vmatpush1.msra.mxu0 0.0
  %1122 = vmatprep.subr.mxu0 0.0
  %1123 = vmatpush1.msra.mxu0 0.0
  %1124 = vmatprep.subr.mxu0 0.0
  %1125 = vmatpush1.msra.mxu0 0.0
  %1126 = vmatprep.subr.mxu0 0.0
  %1127 = vmatpush1.msra.mxu0 0.0
  %1128 = vmatprep.subr.mxu0 0.0
  %1129 = vmatpush1.msra.mxu0 0.0
  %1130 = vmatprep.subr.mxu0 0.0
  %1131 = vmatpush1.msra.mxu0 0.0
  %1132 = vmatprep.subr.mxu0 0.0
  %1133 = vmatpush1.msra.mxu0 0.0
  %1134 = vmatprep.subr.mxu0 0.0
  %1135 = vmatpush1.msra.mxu0 0.0
  %1136 = vmatprep.subr.mxu0 0.0
  %1137 = vmatpush1.msra.mxu0 0.0
  %1138 = vmatprep.subr.mxu0 0.0
  %1139 = vmatpush1.msra.mxu0 0.0
  %1140 = vmatprep.subr.mxu0 0.0
  %1141 = vmatpush1.msra.mxu0 0.0
  %1142 = vmatprep.subr.mxu0 0.0
  %1143 = vmatpush1.msra.mxu0 0.0
  %1144 = vmatprep.subr.mxu0 0.0
  %1145 = vmatpush1.msra.mxu0 0.0
  %1146 = vmatprep.subr.mxu0 0.0
  %1147 = vmatpush1.msra.mxu0 0.0
  %1148 = vmatprep.subr.mxu0 0.0
  %1149 = vmatpush1.msra.mxu0 0.0
  %1150 = vmatprep.subr.mxu0 0.0
  %1151 = vmatpush1.msra.mxu0 0.0
  %1152 = vmatprep.subr.mxu0 0.0
  %1153 = vmatpush1.msra.mxu0 0.0
  %1154 = vmatprep.subr.mxu0 0.0
  %1155 = vmatpush1.msra.mxu0 0.0
  %1156 = vmatprep.subr.mxu0 0.0
  %1157 = vmatpush1.msra.mxu0 0.0
  %1158 = vmatprep.subr.mxu0 0.0
  %1159 = vmatpush1.msra.mxu0 0.0
  %1160 = vmatprep.subr.mxu0 0.0
  %1161 = vmatpush1.msra.mxu0 0.0
  %1162 = vmatprep.subr.mxu0 0.0
  %1163 = vmatpush1.msra.mxu0 0.0
  %1164 = vmatprep.mubr.f32.mxu0 0.0
  %1165 = vmatmul.mubr.f32.gmra.mrb[0].mxu0 %v1077
  %v1166 = vpop.f32.mrb[0].mxu0
  %v1167 = vadd.f32 %v1069, %v1166
  %v1168 = vpop.f32.mrb[0].mxu0
  %v1169 = vadd.f32 %v1073, %v1168
  %1170 = vmatprep.mubr.f32.mxu0 0.0
  %1171 = vmatmul.mubr.f32.gmra.mrb[0].mxu0 %v1080
  %v1172 = vpop.f32.mrb[0].mxu0
  %v1173 = vadd.f32 %v1069, %v1172
  %v1174 = vpop.f32.mrb[0].mxu0
  %v1175 = vadd.f32 %v1073, %v1174
  %1176 = vmatprep.mubr.f32.mxu0 0.0
  %1177 = vmatmul.mubr.f32.gmra.mrb[0].mxu0 %v1083
  %v1178 = vpop.f32.mrb[0].mxu0
  %v1179 = vadd.f32 %v1069, %v1178
  %v1180 = vpop.f32.mrb[0].mxu0
  %v1181 = vadd.f32 %v1073, %v1180
  %1182 = vmatprep.mubr.f32.mxu0 0.0
  %1183 = vmatmul.mubr.f32.gmra.mrb[0].mxu0 %v1086
  %v1184 = vpop.f32.mrb[0].mxu0
  %v1185 = vadd.f32 %v1069, %v1184
  %v1186 = vpop.f32.mrb[0].mxu0
  %v1187 = vadd.f32 %v1073, %v1186
  %1188 = vmatprep.mubr.f32.mxu0 0.0
  %1189 = vmatmul.mubr.f32.gmra.mrb[0].mxu0 %v1089
  %v1190 = vpop.f32.mrb[0].mxu0
  %v1191 = vadd.f32 %v1069, %v1190
  %v1192 = vpop.f32.mrb[0].mxu0
  %v1193 = vadd.f32 %v1073, %v1192
  %1194 = vmatprep.mubr.f32.mxu0 0.0
  %1195 = vmatmul.mubr.f32.gmra.mrb[0].mxu0 %v1092
  %v1196 = vpop.f32.mrb[0].mxu0
  %v1197 = vadd.f32 %v1069, %v1196
  %v1198 = vpop.f32.mrb[0].mxu0
  %v1199 = vadd.f32 %v1073, %v1198
  %1200 = vmatprep.mubr.f32.mxu0 0.0
  %1201 = vmatmul.mubr.f32.gmra.mrb[0].mxu0 %v1095
  %v1202 = vpop.f32.mrb[0].mxu0
  %v1203 = vadd.f32 %v1069, %v1202
  %v1204 = vpop.f32.mrb[0].mxu0
  %v1205 = vadd.f32 %v1073, %v1204
  %1206 = vmatprep.mubr.f32.mxu0 0.0
  %1207 = vmatmul.mubr.f32.gmra.mrb[0].mxu0 %v1098
  %v1208 = vpop.f32.mrb[0].mxu0
  %v1209 = vadd.f32 %v1069, %v1208
  %v1210 = vpop.f32.mrb[0].mxu0
  %v1211 = vadd.f32 %v1073, %v1210
  %1212 = vdwg.mxu0
  %v1213 = vadd.s32 %v206, 128
  %v1214 = vmul.u32 %v44, 33
  %v1215 = vmul.u32 %v45, 33
  %v1216 = vmul.u32 %v46, 33
  %v1217 = vmul.u32 %v47, 33
  %v1218 = vmul.u32 %v48, 33
  %v1219 = vmul.u32 %v49, 33
  %v1220 = vmul.u32 %v50, 33
  %v1221 = vmul.u32 %v51, 33
  %1222 = vset.pattern.permute.xlu0 0
  %1223 = vperm.xlu0 %1222, %v1214
  %v1224 = vpop.permute.xlu0 %1223
  %1225 = vset.pattern.permute.xlu0 0
  %1226 = vperm.xlu0 %1225, %v1215
  %v1227 = vpop.permute.xlu0 %1226
  %1228 = vset.pattern.permute.xlu0 0
  %1229 = vperm.xlu0 %1228, %v1216
  %v1230 = vpop.permute.xlu0 %1229
  %1231 = vset.pattern.permute.xlu0 0
  %1232 = vperm.xlu0 %1231, %v1217
  %v1233 = vpop.permute.xlu0 %1232
  %1234 = vset.pattern.permute.xlu0 0
  %1235 = vperm.xlu0 %1234, %v1218
  %v1236 = vpop.permute.xlu0 %1235
  %1237 = vset.pattern.permute.xlu0 0
  %1238 = vperm.xlu0 %1237, %v1219
  %v1239 = vpop.permute.xlu0 %1238
  %1240 = vset.pattern.permute.xlu0 0
  %1241 = vperm.xlu0 %1240, %v1220
  %v1242 = vpop.permute.xlu0 %1241
  %1243 = vset.pattern.permute.xlu0 0
  %1244 = vperm.xlu0 %1243, %v1221
  %v1245 = vpop.permute.xlu0 %1244
  %vm1246 = vcmp.ge.s32.totalorder %v206, %v1224
  %vm1247 = vcmp.ge.s32.totalorder %v1213, %v1224
  %vm1248 = vcmp.ge.s32.totalorder %v206, %v1227
  %vm1249 = vcmp.ge.s32.totalorder %v1213, %v1227
  %vm1250 = vcmp.ge.s32.totalorder %v206, %v1230
  %vm1251 = vcmp.ge.s32.totalorder %v1213, %v1230
  %vm1252 = vcmp.ge.s32.totalorder %v206, %v1233
  %vm1253 = vcmp.ge.s32.totalorder %v1213, %v1233
  %vm1254 = vcmp.ge.s32.totalorder %v206, %v1236
  %vm1255 = vcmp.ge.s32.totalorder %v1213, %v1236
  %vm1256 = vcmp.ge.s32.totalorder %v206, %v1239
  %vm1257 = vcmp.ge.s32.totalorder %v1213, %v1239
  %vm1258 = vcmp.ge.s32.totalorder %v206, %v1242
  %vm1259 = vcmp.ge.s32.totalorder %v1213, %v1242
  %vm1260 = vcmp.ge.s32.totalorder %v206, %v1245
  %vm1261 = vcmp.ge.s32.totalorder %v1213, %v1245
  %v1262 = vadd.s32 %v1214, 33
  %v1263 = vadd.s32 %v1215, 33
  %v1264 = vadd.s32 %v1216, 33
  %v1265 = vadd.s32 %v1217, 33
  %v1266 = vadd.s32 %v1218, 33
  %v1267 = vadd.s32 %v1219, 33
  %v1268 = vadd.s32 %v1220, 33
  %v1269 = vadd.s32 %v1221, 33
  %1270 = vset.pattern.permute.xlu0 0
  %1271 = vperm.xlu0 %1270, %v1262
  %v1272 = vpop.permute.xlu0 %1271
  %1273 = vset.pattern.permute.xlu0 0
  %1274 = vperm.xlu0 %1273, %v1263
  %v1275 = vpop.permute.xlu0 %1274
  %1276 = vset.pattern.permute.xlu0 0
  %1277 = vperm.xlu0 %1276, %v1264
  %v1278 = vpop.permute.xlu0 %1277
  %1279 = vset.pattern.permute.xlu0 0
  %1280 = vperm.xlu0 %1279, %v1265
  %v1281 = vpop.permute.xlu0 %1280
  %1282 = vset.pattern.permute.xlu0 0
  %1283 = vperm.xlu0 %1282, %v1266
  %v1284 = vpop.permute.xlu0 %1283
  %1285 = vset.pattern.permute.xlu0 0
  %1286 = vperm.xlu0 %1285, %v1267
  %v1287 = vpop.permute.xlu0 %1286
  %1288 = vset.pattern.permute.xlu0 0
  %1289 = vperm.xlu0 %1288, %v1268
  %v1290 = vpop.permute.xlu0 %1289
  %1291 = vset.pattern.permute.xlu0 0
  %1292 = vperm.xlu0 %1291, %v1269
  %v1293 = vpop.permute.xlu0 %1292
  %vm1294 = vcmp.lt.s32.totalorder %v206, %v1272
  %vm1295 = vcmp.lt.s32.totalorder %v1213, %v1272
  %vm1296 = vcmp.lt.s32.totalorder %v206, %v1275
  %vm1297 = vcmp.lt.s32.totalorder %v1213, %v1275
  %vm1298 = vcmp.lt.s32.totalorder %v206, %v1278
  %vm1299 = vcmp.lt.s32.totalorder %v1213, %v1278
  %vm1300 = vcmp.lt.s32.totalorder %v206, %v1281
  %vm1301 = vcmp.lt.s32.totalorder %v1213, %v1281
  %vm1302 = vcmp.lt.s32.totalorder %v206, %v1284
  %vm1303 = vcmp.lt.s32.totalorder %v1213, %v1284
  %vm1304 = vcmp.lt.s32.totalorder %v206, %v1287
  %vm1305 = vcmp.lt.s32.totalorder %v1213, %v1287
  %vm1306 = vcmp.lt.s32.totalorder %v206, %v1290
  %vm1307 = vcmp.lt.s32.totalorder %v1213, %v1290
  %vm1308 = vcmp.lt.s32.totalorder %v206, %v1293
  %vm1309 = vcmp.lt.s32.totalorder %v1213, %v1293
  %vm1310 = vmand %vm1246, %vm1294
  %vm1311 = vmand %vm1247, %vm1295
  %vm1312 = vmand %vm1248, %vm1296
  %vm1313 = vmand %vm1249, %vm1297
  %vm1314 = vmand %vm1250, %vm1298
  %vm1315 = vmand %vm1251, %vm1299
  %vm1316 = vmand %vm1252, %vm1300
  %vm1317 = vmand %vm1253, %vm1301
  %vm1318 = vmand %vm1254, %vm1302
  %vm1319 = vmand %vm1255, %vm1303
  %vm1320 = vmand %vm1256, %vm1304
  %vm1321 = vmand %vm1257, %vm1305
  %vm1322 = vmand %vm1258, %vm1306
  %vm1323 = vmand %vm1259, %vm1307
  %vm1324 = vmand %vm1260, %vm1308
  %vm1325 = vmand %vm1261, %vm1309
  %v1326 = vsel %vm1310, %v1167, 0.0
  %v1327 = vsel %vm1311, %v1169, 0.0
  %v1328 = vsel %vm1312, %v1173, 0.0
  %v1329 = vsel %vm1313, %v1175, 0.0
  %v1330 = vsel %vm1314, %v1179, 0.0
  %v1331 = vsel %vm1315, %v1181, 0.0
  %v1332 = vsel %vm1316, %v1185, 0.0
  %v1333 = vsel %vm1317, %v1187, 0.0
  %v1334 = vsel %vm1318, %v1191, 0.0
  %v1335 = vsel %vm1319, %v1193, 0.0
  %v1336 = vsel %vm1320, %v1197, 0.0
  %v1337 = vsel %vm1321, %v1199, 0.0
  %v1338 = vsel %vm1322, %v1203, 0.0
  %v1339 = vsel %vm1323, %v1205, 0.0
  %v1340 = vsel %vm1324, %v1209, 0.0
  %v1341 = vsel %vm1325, %v1211, 0.0
  %1350 = vrot.lane.b32.xlu0 %v1326, 95
  %v1351 = vpop.permute.xlu0 %1350
  %1352 = vrot.lane.b32.xlu0 %v1328, 95
  %v1353 = vpop.permute.xlu0 %1352
  %1354 = vrot.lane.b32.xlu0 %v1330, 95
  %v1355 = vpop.permute.xlu0 %1354
  %1356 = vrot.lane.b32.xlu0 %v1332, 95
  %v1357 = vpop.permute.xlu0 %1356
  %1358 = vrot.lane.b32.xlu0 %v1334, 95
  %v1359 = vpop.permute.xlu0 %1358
  %1360 = vrot.lane.b32.xlu0 %v1336, 95
  %v1361 = vpop.permute.xlu0 %1360
  %1362 = vrot.lane.b32.xlu0 %v1338, 95
  %v1363 = vpop.permute.xlu0 %1362
  %1364 = vrot.lane.b32.xlu0 %v1340, 95
  %v1365 = vpop.permute.xlu0 %1364
  %v1374 = vadd.f32 %v1326, %v1351
  %v1375 = vadd.f32 %v1328, %v1353
  %v1376 = vadd.f32 %v1330, %v1355
  %v1377 = vadd.f32 %v1332, %v1357
  %v1378 = vadd.f32 %v1334, %v1359
  %v1379 = vadd.f32 %v1336, %v1361
  %v1380 = vadd.f32 %v1338, %v1363
  %v1381 = vadd.f32 %v1340, %v1365
  %1382 = vrot.lane.b32.xlu0 %v1326, 62
  %v1383 = vpop.permute.xlu0 %1382
  %1384 = vrot.lane.b32.xlu0 %v1328, 62
  %v1385 = vpop.permute.xlu0 %1384
  %1386 = vrot.lane.b32.xlu0 %v1330, 62
  %v1387 = vpop.permute.xlu0 %1386
  %1388 = vrot.lane.b32.xlu0 %v1332, 62
  %v1389 = vpop.permute.xlu0 %1388
  %1390 = vrot.lane.b32.xlu0 %v1334, 62
  %v1391 = vpop.permute.xlu0 %1390
  %1392 = vrot.lane.b32.xlu0 %v1336, 62
  %v1393 = vpop.permute.xlu0 %1392
  %1394 = vrot.lane.b32.xlu0 %v1338, 62
  %v1395 = vpop.permute.xlu0 %1394
  %1396 = vrot.lane.b32.xlu0 %v1340, 62
  %v1397 = vpop.permute.xlu0 %1396
  %v1406 = vadd.f32 %v1374, %v1383
  %v1407 = vadd.f32 %v1375, %v1385
  %v1408 = vadd.f32 %v1376, %v1387
  %v1409 = vadd.f32 %v1377, %v1389
  %v1410 = vadd.f32 %v1378, %v1391
  %v1411 = vadd.f32 %v1379, %v1393
  %v1412 = vadd.f32 %v1380, %v1395
  %v1413 = vadd.f32 %v1381, %v1397
  %1422 = vrot.lane.b32.xlu0 %v1326, 29
  %v1423 = vpop.permute.xlu0 %1422
  %1424 = vrot.lane.b32.xlu0 %v1327, 29
  %v1425 = vpop.permute.xlu0 %1424
  %1426 = vrot.lane.b32.xlu0 %v1328, 29
  %v1427 = vpop.permute.xlu0 %1426
  %1428 = vrot.lane.b32.xlu0 %v1329, 29
  %v1429 = vpop.permute.xlu0 %1428
  %1430 = vrot.lane.b32.xlu0 %v1330, 29
  %v1431 = vpop.permute.xlu0 %1430
  %1432 = vrot.lane.b32.xlu0 %v1331, 29
  %v1433 = vpop.permute.xlu0 %1432
  %1434 = vrot.lane.b32.xlu0 %v1332, 29
  %v1435 = vpop.permute.xlu0 %1434
  %1436 = vrot.lane.b32.xlu0 %v1333, 29
  %v1437 = vpop.permute.xlu0 %1436
  %1438 = vrot.lane.b32.xlu0 %v1334, 29
  %v1439 = vpop.permute.xlu0 %1438
  %1440 = vrot.lane.b32.xlu0 %v1335, 29
  %v1441 = vpop.permute.xlu0 %1440
  %1442 = vrot.lane.b32.xlu0 %v1336, 29
  %v1443 = vpop.permute.xlu0 %1442
  %1444 = vrot.lane.b32.xlu0 %v1337, 29
  %v1445 = vpop.permute.xlu0 %1444
  %1446 = vrot.lane.b32.xlu0 %v1338, 29
  %v1447 = vpop.permute.xlu0 %1446
  %1448 = vrot.lane.b32.xlu0 %v1339, 29
  %v1449 = vpop.permute.xlu0 %1448
  %1450 = vrot.lane.b32.xlu0 %v1340, 29
  %v1451 = vpop.permute.xlu0 %1450
  %1452 = vrot.lane.b32.xlu0 %v1341, 29
  %v1453 = vpop.permute.xlu0 %1452
  %vm1454 = vcmask 236544
  %v1455 = vsel %vm1454, %v1423, %v1425
  %v1456 = vsel %vm1454, %v1427, %v1429
  %v1457 = vsel %vm1454, %v1431, %v1433
  %v1458 = vsel %vm1454, %v1435, %v1437
  %v1459 = vsel %vm1454, %v1439, %v1441
  %v1460 = vsel %vm1454, %v1443, %v1445
  %v1461 = vsel %vm1454, %v1447, %v1449
  %v1462 = vsel %vm1454, %v1451, %v1453
  %v1471 = vadd.f32 %v1406, %v1455
  %v1472 = vadd.f32 %v1407, %v1456
  %v1473 = vadd.f32 %v1408, %v1457
  %v1474 = vadd.f32 %v1409, %v1458
  %v1475 = vadd.f32 %v1410, %v1459
  %v1476 = vadd.f32 %v1411, %v1460
  %v1477 = vadd.f32 %v1412, %v1461
  %v1478 = vadd.f32 %v1413, %v1462
  %v1479 = vld [vmem:[%s11] sm:$0xff]
  %v1480 = vld [vmem:[%s11 + $0x8] sm:$0xff]
  %v1481 = vld [vmem:[%s11 + $0x10] sm:$0xff]
  %v1482 = vld [vmem:[%s11 + $0x18] sm:$0xff]
  %v1483 = vld [vmem:[%s2] sm:$0xff]
  %v1484 = vld [vmem:[%s2 + $0x8] sm:$0xff]
  %v1485 = vld [vmem:[%s2 + $0x10] sm:$0xff]
  %v1486 = vld [vmem:[%s2 + $0x18] sm:$0xff]
  %v1487 = vld [vmem:[%s2 + $0x20] sm:$0xff]
  %v1488 = vld [vmem:[%s2 + $0x28] sm:$0xff]
  %v1489 = vld [vmem:[%s2 + $0x30] sm:$0xff]
  %v1490 = vld [vmem:[%s2 + $0x38] sm:$0xff]
  %v1491 = vld [vmem:[%s11 + $0x20] sm:$0xff]
  %v1492 = vld [vmem:[%s11 + $0x28] sm:$0x7f]
  %vm1493 = vcmask 121856
  %v1495 = vsel %vm1493, %v1483, 0
  %v1498 = vsel %vm1493, %v1484, 0
  %v1501 = vsel %vm1493, %v1485, 0
  %v1504 = vsel %vm1493, %v1486, 0
  %v1507 = vsel %vm1493, %v1487, 0
  %v1510 = vsel %vm1493, %v1488, 0
  %v1513 = vsel %vm1493, %v1489, 0
  %v1516 = vsel %vm1493, %v1490, 0
  %vm1518 = vcmask 1046528
  %v1520 = vsel %vm1518, %v1492, 0
  %1522 = vmatprep.subr.mxu0 0.0
  %1523 = vmatpush1.msra.mxu0 %v1491
  %1524 = vmatprep.subr.mxu0 0.0
  %1525 = vmatpush1.msra.mxu0 %v1520
  %1526 = vmatprep.subr.mxu0 0.0
  %1527 = vmatpush1.msra.mxu0 0.0
  %1528 = vmatprep.subr.mxu0 0.0
  %1529 = vmatpush1.msra.mxu0 0.0
  %1530 = vmatprep.subr.mxu0 0.0
  %1531 = vmatpush1.msra.mxu0 0.0
  %1532 = vmatprep.subr.mxu0 0.0
  %1533 = vmatpush1.msra.mxu0 0.0
  %1534 = vmatprep.subr.mxu0 0.0
  %1535 = vmatpush1.msra.mxu0 0.0
  %1536 = vmatprep.subr.mxu0 0.0
  %1537 = vmatpush1.msra.mxu0 0.0
  %1538 = vmatprep.subr.mxu0 0.0
  %1539 = vmatpush1.msra.mxu0 0.0
  %1540 = vmatprep.subr.mxu0 0.0
  %1541 = vmatpush1.msra.mxu0 0.0
  %1542 = vmatprep.subr.mxu0 0.0
  %1543 = vmatpush1.msra.mxu0 0.0
  %1544 = vmatprep.subr.mxu0 0.0
  %1545 = vmatpush1.msra.mxu0 0.0
  %1546 = vmatprep.subr.mxu0 0.0
  %1547 = vmatpush1.msra.mxu0 0.0
  %1548 = vmatprep.subr.mxu0 0.0
  %1549 = vmatpush1.msra.mxu0 0.0
  %1550 = vmatprep.subr.mxu0 0.0
  %1551 = vmatpush1.msra.mxu0 0.0
  %1552 = vmatprep.subr.mxu0 0.0
  %1553 = vmatpush1.msra.mxu0 0.0
  %1554 = vmatprep.subr.mxu0 0.0
  %1555 = vmatpush1.msra.mxu0 0.0
  %1556 = vmatprep.subr.mxu0 0.0
  %1557 = vmatpush1.msra.mxu0 0.0
  %1558 = vmatprep.subr.mxu0 0.0
  %1559 = vmatpush1.msra.mxu0 0.0
  %1560 = vmatprep.subr.mxu0 0.0
  %1561 = vmatpush1.msra.mxu0 0.0
  %1562 = vmatprep.subr.mxu0 0.0
  %1563 = vmatpush1.msra.mxu0 0.0
  %1564 = vmatprep.subr.mxu0 0.0
  %1565 = vmatpush1.msra.mxu0 0.0
  %1566 = vmatprep.subr.mxu0 0.0
  %1567 = vmatpush1.msra.mxu0 0.0
  %1568 = vmatprep.subr.mxu0 0.0
  %1569 = vmatpush1.msra.mxu0 0.0
  %1570 = vmatprep.subr.mxu0 0.0
  %1571 = vmatpush1.msra.mxu0 0.0
  %1572 = vmatprep.subr.mxu0 0.0
  %1573 = vmatpush1.msra.mxu0 0.0
  %1574 = vmatprep.subr.mxu0 0.0
  %1575 = vmatpush1.msra.mxu0 0.0
  %1576 = vmatprep.subr.mxu0 0.0
  %1577 = vmatpush1.msra.mxu0 0.0
  %1578 = vmatprep.subr.mxu0 0.0
  %1579 = vmatpush1.msra.mxu0 0.0
  %1580 = vmatprep.subr.mxu0 0.0
  %1581 = vmatpush1.msra.mxu0 0.0
  %1582 = vmatprep.subr.mxu0 0.0
  %1583 = vmatpush1.msra.mxu0 0.0
  %1584 = vmatprep.subr.mxu0 0.0
  %1585 = vmatpush1.msra.mxu0 0.0
  %1586 = vmatprep.mubr.f32.mxu0 0.0
  %1587 = vmatmul.mubr.f32.gmra.mrb[0].mxu0 %v1495
  %v1588 = vpop.f32.mrb[0].mxu0
  %v1589 = vadd.f32 0.0, %v1588
  %v1590 = vpop.f32.mrb[0].mxu0
  %1591 = vmatprep.mubr.f32.mxu0 0.0
  %1592 = vmatmul.mubr.f32.gmra.mrb[0].mxu0 %v1498
  %v1593 = vpop.f32.mrb[0].mxu0
  %v1594 = vadd.f32 0.0, %v1593
  %v1595 = vpop.f32.mrb[0].mxu0
  %1596 = vmatprep.mubr.f32.mxu0 0.0
  %1597 = vmatmul.mubr.f32.gmra.mrb[0].mxu0 %v1501
  %v1598 = vpop.f32.mrb[0].mxu0
  %v1599 = vadd.f32 0.0, %v1598
  %v1600 = vpop.f32.mrb[0].mxu0
  %1601 = vmatprep.mubr.f32.mxu0 0.0
  %1602 = vmatmul.mubr.f32.gmra.mrb[0].mxu0 %v1504
  %v1603 = vpop.f32.mrb[0].mxu0
  %v1604 = vadd.f32 0.0, %v1603
  %v1605 = vpop.f32.mrb[0].mxu0
  %1606 = vmatprep.mubr.f32.mxu0 0.0
  %1607 = vmatmul.mubr.f32.gmra.mrb[0].mxu0 %v1507
  %v1608 = vpop.f32.mrb[0].mxu0
  %v1609 = vadd.f32 0.0, %v1608
  %v1610 = vpop.f32.mrb[0].mxu0
  %1611 = vmatprep.mubr.f32.mxu0 0.0
  %1612 = vmatmul.mubr.f32.gmra.mrb[0].mxu0 %v1510
  %v1613 = vpop.f32.mrb[0].mxu0
  %v1614 = vadd.f32 0.0, %v1613
  %v1615 = vpop.f32.mrb[0].mxu0
  %1616 = vmatprep.mubr.f32.mxu0 0.0
  %1617 = vmatmul.mubr.f32.gmra.mrb[0].mxu0 %v1513
  %v1618 = vpop.f32.mrb[0].mxu0
  %v1619 = vadd.f32 0.0, %v1618
  %v1620 = vpop.f32.mrb[0].mxu0
  %1621 = vmatprep.mubr.f32.mxu0 0.0
  %1622 = vmatmul.mubr.f32.gmra.mrb[0].mxu0 %v1516
  %v1623 = vpop.f32.mrb[0].mxu0
  %v1624 = vadd.f32 0.0, %v1623
  %v1625 = vpop.f32.mrb[0].mxu0
  %1626 = vdwg.mxu0
  %v1628 = vsel %vm531, %v1471, 0
  %v1631 = vsel %vm531, %v1472, 0
  %v1634 = vsel %vm531, %v1473, 0
  %v1637 = vsel %vm531, %v1474, 0
  %v1640 = vsel %vm531, %v1475, 0
  %v1643 = vsel %vm531, %v1476, 0
  %v1646 = vsel %vm531, %v1477, 0
  %v1649 = vsel %vm531, %v1478, 0
  %1651 = vmatprep.subr.mxu0 0.0
  %1652 = vmatpush1.msra.mxu0 %v1479
  %1653 = vmatprep.subr.mxu0 0.0
  %1654 = vmatpush1.msra.mxu0 %v1480
  %1655 = vmatprep.subr.mxu0 0.0
  %1656 = vmatpush1.msra.mxu0 %v1481
  %1657 = vmatprep.subr.mxu0 0.0
  %1658 = vmatpush1.msra.mxu0 %v1482
  %1659 = vmatprep.subr.mxu0 0.0
  %1660 = vmatpush1.msra.mxu0 0.0
  %1661 = vmatprep.subr.mxu0 0.0
  %1662 = vmatpush1.msra.mxu0 0.0
  %1663 = vmatprep.subr.mxu0 0.0
  %1664 = vmatpush1.msra.mxu0 0.0
  %1665 = vmatprep.subr.mxu0 0.0
  %1666 = vmatpush1.msra.mxu0 0.0
  %1667 = vmatprep.subr.mxu0 0.0
  %1668 = vmatpush1.msra.mxu0 0.0
  %1669 = vmatprep.subr.mxu0 0.0
  %1670 = vmatpush1.msra.mxu0 0.0
  %1671 = vmatprep.subr.mxu0 0.0
  %1672 = vmatpush1.msra.mxu0 0.0
  %1673 = vmatprep.subr.mxu0 0.0
  %1674 = vmatpush1.msra.mxu0 0.0
  %1675 = vmatprep.subr.mxu0 0.0
  %1676 = vmatpush1.msra.mxu0 0.0
  %1677 = vmatprep.subr.mxu0 0.0
  %1678 = vmatpush1.msra.mxu0 0.0
  %1679 = vmatprep.subr.mxu0 0.0
  %1680 = vmatpush1.msra.mxu0 0.0
  %1681 = vmatprep.subr.mxu0 0.0
  %1682 = vmatpush1.msra.mxu0 0.0
  %1683 = vmatprep.subr.mxu0 0.0
  %1684 = vmatpush1.msra.mxu0 0.0
  %1685 = vmatprep.subr.mxu0 0.0
  %1686 = vmatpush1.msra.mxu0 0.0
  %1687 = vmatprep.subr.mxu0 0.0
  %1688 = vmatpush1.msra.mxu0 0.0
  %1689 = vmatprep.subr.mxu0 0.0
  %1690 = vmatpush1.msra.mxu0 0.0
  %1691 = vmatprep.subr.mxu0 0.0
  %1692 = vmatpush1.msra.mxu0 0.0
  %1693 = vmatprep.subr.mxu0 0.0
  %1694 = vmatpush1.msra.mxu0 0.0
  %1695 = vmatprep.subr.mxu0 0.0
  %1696 = vmatpush1.msra.mxu0 0.0
  %1697 = vmatprep.subr.mxu0 0.0
  %1698 = vmatpush1.msra.mxu0 0.0
  %1699 = vmatprep.subr.mxu0 0.0
  %1700 = vmatpush1.msra.mxu0 0.0
  %1701 = vmatprep.subr.mxu0 0.0
  %1702 = vmatpush1.msra.mxu0 0.0
  %1703 = vmatprep.subr.mxu0 0.0
  %1704 = vmatpush1.msra.mxu0 0.0
  %1705 = vmatprep.subr.mxu0 0.0
  %1706 = vmatpush1.msra.mxu0 0.0
  %1707 = vmatprep.subr.mxu0 0.0
  %1708 = vmatpush1.msra.mxu0 0.0
  %1709 = vmatprep.subr.mxu0 0.0
  %1710 = vmatpush1.msra.mxu0 0.0
  %1711 = vmatprep.subr.mxu0 0.0
  %1712 = vmatpush1.msra.mxu0 0.0
  %1713 = vmatprep.subr.mxu0 0.0
  %1714 = vmatpush1.msra.mxu0 0.0
  %1715 = vmatprep.mubr.f32.mxu0 0.0
  %1716 = vmatmul.mubr.f32.gmra.mrb[0].mxu0 %v1628
  %v1717 = vpop.f32.mrb[0].mxu0
  %v1718 = vadd.f32 %v1589, %v1717
  %v1719 = vpop.f32.mrb[0].mxu0
  %1720 = vmatprep.mubr.f32.mxu0 0.0
  %1721 = vmatmul.mubr.f32.gmra.mrb[0].mxu0 %v1631
  %v1722 = vpop.f32.mrb[0].mxu0
  %v1723 = vadd.f32 %v1594, %v1722
  %v1724 = vpop.f32.mrb[0].mxu0
  %1725 = vmatprep.mubr.f32.mxu0 0.0
  %1726 = vmatmul.mubr.f32.gmra.mrb[0].mxu0 %v1634
  %v1727 = vpop.f32.mrb[0].mxu0
  %v1728 = vadd.f32 %v1599, %v1727
  %v1729 = vpop.f32.mrb[0].mxu0
  %1730 = vmatprep.mubr.f32.mxu0 0.0
  %1731 = vmatmul.mubr.f32.gmra.mrb[0].mxu0 %v1637
  %v1732 = vpop.f32.mrb[0].mxu0
  %v1733 = vadd.f32 %v1604, %v1732
  %v1734 = vpop.f32.mrb[0].mxu0
  %1735 = vmatprep.mubr.f32.mxu0 0.0
  %1736 = vmatmul.mubr.f32.gmra.mrb[0].mxu0 %v1640
  %v1737 = vpop.f32.mrb[0].mxu0
  %v1738 = vadd.f32 %v1609, %v1737
  %v1739 = vpop.f32.mrb[0].mxu0
  %1740 = vmatprep.mubr.f32.mxu0 0.0
  %1741 = vmatmul.mubr.f32.gmra.mrb[0].mxu0 %v1643
  %v1742 = vpop.f32.mrb[0].mxu0
  %v1743 = vadd.f32 %v1614, %v1742
  %v1744 = vpop.f32.mrb[0].mxu0
  %1745 = vmatprep.mubr.f32.mxu0 0.0
  %1746 = vmatmul.mubr.f32.gmra.mrb[0].mxu0 %v1646
  %v1747 = vpop.f32.mrb[0].mxu0
  %v1748 = vadd.f32 %v1619, %v1747
  %v1749 = vpop.f32.mrb[0].mxu0
  %1750 = vmatprep.mubr.f32.mxu0 0.0
  %1751 = vmatmul.mubr.f32.gmra.mrb[0].mxu0 %v1649
  %v1752 = vpop.f32.mrb[0].mxu0
  %v1753 = vadd.f32 %v1624, %v1752
  %v1754 = vpop.f32.mrb[0].mxu0
  %1755 = vdwg.mxu0
  %v1756 = vld [vmem:[%s12] sm:$0x1]
  %v1758 = vlaneseq
  %v1759 = vshrl.u32 %v1758, 7
  %v1760 = vsub.s32 0, %v1759
  %v1761 = vrot.slane %v1756, %v1760
  %v1763 = vadd.f32 %v1718, %v1761
  %v1764 = vadd.f32 %v1723, %v1761
  %v1765 = vadd.f32 %v1728, %v1761
  %v1766 = vadd.f32 %v1733, %v1761
  %v1767 = vadd.f32 %v1738, %v1761
  %v1768 = vadd.f32 %v1743, %v1761
  %v1769 = vadd.f32 %v1748, %v1761
  %v1770 = vadd.f32 %v1753, %v1761
  %v1771 = vmul.u32 %v44, 16
  %v1772 = vmul.u32 %v45, 16
  %v1773 = vmul.u32 %v46, 16
  %v1774 = vmul.u32 %v47, 16
  %v1775 = vmul.u32 %v48, 16
  %v1776 = vmul.u32 %v49, 16
  %v1777 = vmul.u32 %v50, 16
  %v1778 = vmul.u32 %v51, 16
  %1779 = vset.pattern.permute.xlu0 0
  %1780 = vperm.xlu0 %1779, %v1771
  %v1781 = vpop.permute.xlu0 %1780
  %1782 = vset.pattern.permute.xlu0 0
  %1783 = vperm.xlu0 %1782, %v1772
  %v1784 = vpop.permute.xlu0 %1783
  %1785 = vset.pattern.permute.xlu0 0
  %1786 = vperm.xlu0 %1785, %v1773
  %v1787 = vpop.permute.xlu0 %1786
  %1788 = vset.pattern.permute.xlu0 0
  %1789 = vperm.xlu0 %1788, %v1774
  %v1790 = vpop.permute.xlu0 %1789
  %1791 = vset.pattern.permute.xlu0 0
  %1792 = vperm.xlu0 %1791, %v1775
  %v1793 = vpop.permute.xlu0 %1792
  %1794 = vset.pattern.permute.xlu0 0
  %1795 = vperm.xlu0 %1794, %v1776
  %v1796 = vpop.permute.xlu0 %1795
  %1797 = vset.pattern.permute.xlu0 0
  %1798 = vperm.xlu0 %1797, %v1777
  %v1799 = vpop.permute.xlu0 %1798
  %1800 = vset.pattern.permute.xlu0 0
  %1801 = vperm.xlu0 %1800, %v1778
  %v1802 = vpop.permute.xlu0 %1801
  %vm1803 = vcmp.ge.s32.totalorder %v206, %v1781
  %vm1804 = vcmp.ge.s32.totalorder %v206, %v1784
  %vm1805 = vcmp.ge.s32.totalorder %v206, %v1787
  %vm1806 = vcmp.ge.s32.totalorder %v206, %v1790
  %vm1807 = vcmp.ge.s32.totalorder %v206, %v1793
  %vm1808 = vcmp.ge.s32.totalorder %v206, %v1796
  %vm1809 = vcmp.ge.s32.totalorder %v206, %v1799
  %vm1810 = vcmp.ge.s32.totalorder %v206, %v1802
  %v1811 = vadd.s32 %v1771, 16
  %v1812 = vadd.s32 %v1772, 16
  %v1813 = vadd.s32 %v1773, 16
  %v1814 = vadd.s32 %v1774, 16
  %v1815 = vadd.s32 %v1775, 16
  %v1816 = vadd.s32 %v1776, 16
  %v1817 = vadd.s32 %v1777, 16
  %v1818 = vadd.s32 %v1778, 16
  %1819 = vset.pattern.permute.xlu0 0
  %1820 = vperm.xlu0 %1819, %v1811
  %v1821 = vpop.permute.xlu0 %1820
  %1822 = vset.pattern.permute.xlu0 0
  %1823 = vperm.xlu0 %1822, %v1812
  %v1824 = vpop.permute.xlu0 %1823
  %1825 = vset.pattern.permute.xlu0 0
  %1826 = vperm.xlu0 %1825, %v1813
  %v1827 = vpop.permute.xlu0 %1826
  %1828 = vset.pattern.permute.xlu0 0
  %1829 = vperm.xlu0 %1828, %v1814
  %v1830 = vpop.permute.xlu0 %1829
  %1831 = vset.pattern.permute.xlu0 0
  %1832 = vperm.xlu0 %1831, %v1815
  %v1833 = vpop.permute.xlu0 %1832
  %1834 = vset.pattern.permute.xlu0 0
  %1835 = vperm.xlu0 %1834, %v1816
  %v1836 = vpop.permute.xlu0 %1835
  %1837 = vset.pattern.permute.xlu0 0
  %1838 = vperm.xlu0 %1837, %v1817
  %v1839 = vpop.permute.xlu0 %1838
  %1840 = vset.pattern.permute.xlu0 0
  %1841 = vperm.xlu0 %1840, %v1818
  %v1842 = vpop.permute.xlu0 %1841
  %vm1843 = vcmp.lt.s32.totalorder %v206, %v1821
  %vm1844 = vcmp.lt.s32.totalorder %v206, %v1824
  %vm1845 = vcmp.lt.s32.totalorder %v206, %v1827
  %vm1846 = vcmp.lt.s32.totalorder %v206, %v1830
  %vm1847 = vcmp.lt.s32.totalorder %v206, %v1833
  %vm1848 = vcmp.lt.s32.totalorder %v206, %v1836
  %vm1849 = vcmp.lt.s32.totalorder %v206, %v1839
  %vm1850 = vcmp.lt.s32.totalorder %v206, %v1842
  %vm1851 = vmand %vm1803, %vm1843
  %vm1852 = vmand %vm1804, %vm1844
  %vm1853 = vmand %vm1805, %vm1845
  %vm1854 = vmand %vm1806, %vm1846
  %vm1855 = vmand %vm1807, %vm1847
  %vm1856 = vmand %vm1808, %vm1848
  %vm1857 = vmand %vm1809, %vm1849
  %vm1858 = vmand %vm1810, %vm1850
  %v1859 = vsel %vm1851, %v1763, 0.0
  %v1860 = vsel %vm1852, %v1764, 0.0
  %v1861 = vsel %vm1853, %v1765, 0.0
  %v1862 = vsel %vm1854, %v1766, 0.0
  %v1863 = vsel %vm1855, %v1767, 0.0
  %v1864 = vsel %vm1856, %v1768, 0.0
  %v1865 = vsel %vm1857, %v1769, 0.0
  %v1866 = vsel %vm1858, %v1770, 0.0
  %1875 = vrot.lane.b32.xlu0 %v1859, 112
  %v1876 = vpop.permute.xlu0 %1875
  %1877 = vrot.lane.b32.xlu0 %v1860, 112
  %v1878 = vpop.permute.xlu0 %1877
  %1879 = vrot.lane.b32.xlu0 %v1861, 112
  %v1880 = vpop.permute.xlu0 %1879
  %1881 = vrot.lane.b32.xlu0 %v1862, 112
  %v1882 = vpop.permute.xlu0 %1881
  %1883 = vrot.lane.b32.xlu0 %v1863, 112
  %v1884 = vpop.permute.xlu0 %1883
  %1885 = vrot.lane.b32.xlu0 %v1864, 112
  %v1886 = vpop.permute.xlu0 %1885
  %1887 = vrot.lane.b32.xlu0 %v1865, 112
  %v1888 = vpop.permute.xlu0 %1887
  %1889 = vrot.lane.b32.xlu0 %v1866, 112
  %v1890 = vpop.permute.xlu0 %1889
  %v1899 = vadd.f32 %v1859, %v1876
  %v1900 = vadd.f32 %v1860, %v1878
  %v1901 = vadd.f32 %v1861, %v1880
  %v1902 = vadd.f32 %v1862, %v1882
  %v1903 = vadd.f32 %v1863, %v1884
  %v1904 = vadd.f32 %v1864, %v1886
  %v1905 = vadd.f32 %v1865, %v1888
  %v1906 = vadd.f32 %v1866, %v1890
  %1907 = vrot.lane.b32.xlu0 %v1859, 96
  %v1908 = vpop.permute.xlu0 %1907
  %1909 = vrot.lane.b32.xlu0 %v1860, 96
  %v1910 = vpop.permute.xlu0 %1909
  %1911 = vrot.lane.b32.xlu0 %v1861, 96
  %v1912 = vpop.permute.xlu0 %1911
  %1913 = vrot.lane.b32.xlu0 %v1862, 96
  %v1914 = vpop.permute.xlu0 %1913
  %1915 = vrot.lane.b32.xlu0 %v1863, 96
  %v1916 = vpop.permute.xlu0 %1915
  %1917 = vrot.lane.b32.xlu0 %v1864, 96
  %v1918 = vpop.permute.xlu0 %1917
  %1919 = vrot.lane.b32.xlu0 %v1865, 96
  %v1920 = vpop.permute.xlu0 %1919
  %1921 = vrot.lane.b32.xlu0 %v1866, 96
  %v1922 = vpop.permute.xlu0 %1921
  %v1931 = vadd.f32 %v1899, %v1908
  %v1932 = vadd.f32 %v1900, %v1910
  %v1933 = vadd.f32 %v1901, %v1912
  %v1934 = vadd.f32 %v1902, %v1914
  %v1935 = vadd.f32 %v1903, %v1916
  %v1936 = vadd.f32 %v1904, %v1918
  %v1937 = vadd.f32 %v1905, %v1920
  %v1938 = vadd.f32 %v1906, %v1922
  %1939 = vrot.lane.b32.xlu0 %v1859, 80
  %v1940 = vpop.permute.xlu0 %1939
  %1941 = vrot.lane.b32.xlu0 %v1860, 80
  %v1942 = vpop.permute.xlu0 %1941
  %1943 = vrot.lane.b32.xlu0 %v1861, 80
  %v1944 = vpop.permute.xlu0 %1943
  %1945 = vrot.lane.b32.xlu0 %v1862, 80
  %v1946 = vpop.permute.xlu0 %1945
  %1947 = vrot.lane.b32.xlu0 %v1863, 80
  %v1948 = vpop.permute.xlu0 %1947
  %1949 = vrot.lane.b32.xlu0 %v1864, 80
  %v1950 = vpop.permute.xlu0 %1949
  %1951 = vrot.lane.b32.xlu0 %v1865, 80
  %v1952 = vpop.permute.xlu0 %1951
  %1953 = vrot.lane.b32.xlu0 %v1866, 80
  %v1954 = vpop.permute.xlu0 %1953
  %v1963 = vadd.f32 %v1931, %v1940
  %v1964 = vadd.f32 %v1932, %v1942
  %v1965 = vadd.f32 %v1933, %v1944
  %v1966 = vadd.f32 %v1934, %v1946
  %v1967 = vadd.f32 %v1935, %v1948
  %v1968 = vadd.f32 %v1936, %v1950
  %v1969 = vadd.f32 %v1937, %v1952
  %v1970 = vadd.f32 %v1938, %v1954
  %v1971 = vmax.f32 %v1963, 0.0
  %v1972 = vmax.f32 %v1964, 0.0
  %v1973 = vmax.f32 %v1965, 0.0
  %v1974 = vmax.f32 %v1966, 0.0
  %v1975 = vmax.f32 %v1967, 0.0
  %v1976 = vmax.f32 %v1968, 0.0
  %v1977 = vmax.f32 %v1969, 0.0
  %v1978 = vmax.f32 %v1970, 0.0
  %v1979 = vsub.f32 0.0, %v1971
  %v1980 = vsub.f32 0.0, %v1972
  %v1981 = vsub.f32 0.0, %v1973
  %v1982 = vsub.f32 0.0, %v1974
  %v1983 = vsub.f32 0.0, %v1975
  %v1984 = vsub.f32 0.0, %v1976
  %v1985 = vsub.f32 0.0, %v1977
  %v1986 = vsub.f32 0.0, %v1978
  %v1987 = vmul.f32 %v1979, 1.442695
  %v1988 = vpow.pop %v1987
  %v1989 = vmul.f32 %v1980, 1.442695
  %v1990 = vpow.pop %v1989
  %v1991 = vmul.f32 %v1981, 1.442695
  %v1992 = vpow.pop %v1991
  %v1993 = vmul.f32 %v1982, 1.442695
  %v1994 = vpow.pop %v1993
  %v1995 = vmul.f32 %v1983, 1.442695
  %v1996 = vpow.pop %v1995
  %v1997 = vmul.f32 %v1984, 1.442695
  %v1998 = vpow.pop %v1997
  %v1999 = vmul.f32 %v1985, 1.442695
  %v2000 = vpow.pop %v1999
  %v2001 = vmul.f32 %v1986, 1.442695
  %v2002 = vpow.pop %v2001
  %v2003 = vadd.f32 %v1988, 1.0
  %v2004 = vadd.f32 %v1990, 1.0
  %v2005 = vadd.f32 %v1992, 1.0
  %v2006 = vadd.f32 %v1994, 1.0
  %v2007 = vadd.f32 %v1996, 1.0
  %v2008 = vadd.f32 %v1998, 1.0
  %v2009 = vadd.f32 %v2000, 1.0
  %v2010 = vadd.f32 %v2002, 1.0
  %v2011 = vrcp.pop %v2003
  %v2012 = vmul.f32 1.0, %v2011
  %v2013 = vrcp.pop %v2004
  %v2014 = vmul.f32 1.0, %v2013
  %v2015 = vrcp.pop %v2005
  %v2016 = vmul.f32 1.0, %v2015
  %v2017 = vrcp.pop %v2006
  %v2018 = vmul.f32 1.0, %v2017
  %v2019 = vrcp.pop %v2007
  %v2020 = vmul.f32 1.0, %v2019
  %v2021 = vrcp.pop %v2008
  %v2022 = vmul.f32 1.0, %v2021
  %v2023 = vrcp.pop %v2009
  %v2024 = vmul.f32 1.0, %v2023
  %v2025 = vrcp.pop %v2010
  %v2026 = vmul.f32 1.0, %v2025
  %vm2027 = vcmask 130048
  %2028 = vst.msk [vmem:[%s13] sm:$0xff] %vm2027, %v2012
  %2029 = vst.msk [vmem:[%s13 + $0x8] sm:$0xff] %vm2027, %v2014
  %2030 = vst.msk [vmem:[%s13 + $0x10] sm:$0xff] %vm2027, %v2016
  %2031 = vst.msk [vmem:[%s13 + $0x18] sm:$0xff] %vm2027, %v2018
  %2032 = vst.msk [vmem:[%s13 + $0x20] sm:$0xff] %vm2027, %v2020
  %2033 = vst.msk [vmem:[%s13 + $0x28] sm:$0xff] %vm2027, %v2022
  %2034 = vst.msk [vmem:[%s13 + $0x30] sm:$0xff] %vm2027, %v2024
  %2035 = vst.msk [vmem:[%s13 + $0x38] sm:$0xff] %vm2027, %v2026
  %v2036 = vsub.f32 0.0, %v1471
  %v2037 = vsub.f32 0.0, %v1472
  %v2038 = vsub.f32 0.0, %v1473
  %v2039 = vsub.f32 0.0, %v1474
  %v2040 = vsub.f32 0.0, %v1475
  %v2041 = vsub.f32 0.0, %v1476
  %v2042 = vsub.f32 0.0, %v1477
  %v2043 = vsub.f32 0.0, %v1478
  %v2044 = vmul.f32 %v2036, 1.442695
  %v2045 = vpow.pop %v2044
  %v2046 = vmul.f32 %v2037, 1.442695
  %v2047 = vpow.pop %v2046
  %v2048 = vmul.f32 %v2038, 1.442695
  %v2049 = vpow.pop %v2048
  %v2050 = vmul.f32 %v2039, 1.442695
  %v2051 = vpow.pop %v2050
  %v2052 = vmul.f32 %v2040, 1.442695
  %v2053 = vpow.pop %v2052
  %v2054 = vmul.f32 %v2041, 1.442695
  %v2055 = vpow.pop %v2054
  %v2056 = vmul.f32 %v2042, 1.442695
  %v2057 = vpow.pop %v2056
  %v2058 = vmul.f32 %v2043, 1.442695
  %v2059 = vpow.pop %v2058
  %v2060 = vadd.f32 %v2045, 1.0
  %v2061 = vadd.f32 %v2047, 1.0
  %v2062 = vadd.f32 %v2049, 1.0
  %v2063 = vadd.f32 %v2051, 1.0
  %v2064 = vadd.f32 %v2053, 1.0
  %v2065 = vadd.f32 %v2055, 1.0
  %v2066 = vadd.f32 %v2057, 1.0
  %v2067 = vadd.f32 %v2059, 1.0
  %v2068 = vrcp.pop %v2060
  %v2069 = vmul.f32 1.0, %v2068
  %v2070 = vrcp.pop %v2061
  %v2071 = vmul.f32 1.0, %v2070
  %v2072 = vrcp.pop %v2062
  %v2073 = vmul.f32 1.0, %v2072
  %v2074 = vrcp.pop %v2063
  %v2075 = vmul.f32 1.0, %v2074
  %v2076 = vrcp.pop %v2064
  %v2077 = vmul.f32 1.0, %v2076
  %v2078 = vrcp.pop %v2065
  %v2079 = vmul.f32 1.0, %v2078
  %v2080 = vrcp.pop %v2066
  %v2081 = vmul.f32 1.0, %v2080
  %v2082 = vrcp.pop %v2067
  %v2083 = vmul.f32 1.0, %v2082
  %2092 = vrot.lane.b32.xlu0 %v2069, 112
  %v2093 = vpop.permute.xlu0 %2092
  %2094 = vrot.lane.b32.xlu0 %v2071, 112
  %v2095 = vpop.permute.xlu0 %2094
  %2096 = vrot.lane.b32.xlu0 %v2073, 112
  %v2097 = vpop.permute.xlu0 %2096
  %2098 = vrot.lane.b32.xlu0 %v2075, 112
  %v2099 = vpop.permute.xlu0 %2098
  %2100 = vrot.lane.b32.xlu0 %v2077, 112
  %v2101 = vpop.permute.xlu0 %2100
  %2102 = vrot.lane.b32.xlu0 %v2079, 112
  %v2103 = vpop.permute.xlu0 %2102
  %2104 = vrot.lane.b32.xlu0 %v2081, 112
  %v2105 = vpop.permute.xlu0 %2104
  %2106 = vrot.lane.b32.xlu0 %v2083, 112
  %v2107 = vpop.permute.xlu0 %2106
  %vm2116 = vcmask 138368
  %2117 = vst.msk [vmem:[%s13] sm:$0xff] %vm2116, %v2093
  %2118 = vst.msk [vmem:[%s13 + $0x8] sm:$0xff] %vm2116, %v2095
  %2119 = vst.msk [vmem:[%s13 + $0x10] sm:$0xff] %vm2116, %v2097
  %2120 = vst.msk [vmem:[%s13 + $0x18] sm:$0xff] %vm2116, %v2099
  %2121 = vst.msk [vmem:[%s13 + $0x20] sm:$0xff] %vm2116, %v2101
  %2122 = vst.msk [vmem:[%s13 + $0x28] sm:$0xff] %vm2116, %v2103
  %2123 = vst.msk [vmem:[%s13 + $0x30] sm:$0xff] %vm2116, %v2105
  %2124 = vst.msk [vmem:[%s13 + $0x38] sm:$0xff] %vm2116, %v2107
  // Predicated region
  $region54: #{_lambda_.1} parent=0 // pred_check
    _
  $region55: #{_lambda_.1} parent=0 // pred_check_branch
    %2126 = sbr.rel (0) target = $region57
  $region56: #{_lambda_.1} parent=0 // pred_region
    _
  $region57: #{_lambda_.1} parent=0 // pred_fallthru
    _
  // Predicated region
  $region58: #{_lambda_.1} parent=0 // pred_check
    _
  $region59: #{_lambda_.1} parent=0 // pred_check_branch
    %2128 = sbr.rel (0) target = $region61
  $region60: #{_lambda_.1} parent=0 // pred_region
    _
  $region61: #{_lambda_.1} parent=0 // pred_fallthru
    _

</llo_original>
